<compile_context>
chip_gen: v5e
topology: v5e:2x2
jax: 0.10.0
libtpu: 0.0.40
codegen_flags: <defaults>
</compile_context>

<pallas_src>
import functools

import jax
import jax.numpy as jnp
from jax.experimental import pallas as pl
from jax.experimental.pallas import tpu as pltpu


def _round_up(x, m):
    return ((x + m - 1) // m) * m


def _cdiv(a, b):
    return (a + b - 1) // b


def _apply_nl(y, nl, prelu_alpha):
    if nl == "relu":
        return jnp.maximum(y, 0.0)
    if nl == "prelu":
        return jnp.where(y > 0.0, y, jnp.float32(prelu_alpha) * y)
    return y


def module_padding(kernel_size, same_padding, dilation=1):
    """Padding rule of misc/layer.py::Conv2d."""
    if dilation != 1:
        return dilation
    return (kernel_size - 1) // 2 if same_padding else 0


def _vmem_capacity_bytes():
    try:
        cap = getattr(pltpu.get_tpu_info(), "vmem_capacity_bytes", None)
        if cap:
            return int(cap)
    except Exception:
        pass
    return 64 * 1024 * 1024      # conservative default (v7x per-core VMEM)


def _padded_bytes(shape, dtype):
    """Layout-aware VMEM footprint: minor dim padded to 128 lanes, second-minor
    dim to the dtype's sublane tile (8 f32 / 16 bf16 / 32 int8)."""
    itemsize = jnp.dtype(dtype).itemsize
    sub = 8 * max(1, 4 // itemsize)
    if len(shape) < 2:
        n = int(shape[0]) if shape else 1
        return _round_up(n * itemsize, 4096)
    lead = 1
    for d in shape[:-2]:
        lead *= int(d)
    return (lead * _round_up(int(shape[-2]), sub)
            * _round_up(int(shape[-1]), 128) * itemsize)


# ---------------------------------------------------------------------------
# Path 1 (fused): KW folded into the contraction, KH taps accumulated in a
# VMEM f32 scratch; stride handled by an H-phase split done in the wrapper so
# every tap is an aligned, contiguous leading-dim slice. One grid step / image.
# ---------------------------------------------------------------------------
def _conv_fused_kernel(x_ref, w_ref, shift_ref, o_ref, acc_ref, *,
                       KH, dil, stride, Ho, Wo_p, nl, prelu_alpha):
    kc = x_ref.shape[-1]                       # KW * Cin (contraction depth)
    for kh in range(KH):                       # static, unrolled
        off = kh * dil
        p, q = off % stride, off // stride     # phase / row offset (static)
        # (Ho, Wo_p, kc) -> (Ho*Wo_p, kc): free, Wo_p is a multiple of 16.
        tap = x_ref[0, p, q:q + Ho, :, :].reshape(Ho * Wo_p, kc)
        contrib = jnp.dot(tap, w_ref[kh], preferred_element_type=jnp.float32)
        if kh == 0:
            acc_ref[...] = contrib
        else:
            acc_ref[...] += contrib
    y = _apply_nl(acc_ref[...] + shift_ref[...], nl, prelu_alpha)
    o_ref[...] = y[None].astype(o_ref.dtype)


# ---------------------------------------------------------------------------
# Path 2 (general fallback): host im2col + tiled matmul, f32 accumulator.
# The weight panel is kept resident in VMEM (block index independent of the
# row/contraction step) and the current K-chunk is sliced in-kernel.
# ---------------------------------------------------------------------------
def _conv_mm_kernel(a_ref, w_ref, shift_ref, o_ref, acc_ref, *,
                    tk, num_k, slice_w, nl, prelu_alpha):
    k = pl.program_id(2)

    @pl.when(k == 0)
    def _():
        acc_ref[...] = jnp.zeros_like(acc_ref)

    if slice_w:
        start = pl.multiple_of(k * tk, tk)
        w_blk = w_ref[pl.ds(start, tk), :]
    else:
        w_blk = w_ref[...]
    acc_ref[...] += jnp.dot(a_ref[...], w_blk,
                            preferred_element_type=jnp.float32)

    @pl.when(k == num_k - 1)
    def _():
        y = _apply_nl(acc_ref[...] + shift_ref[...], nl, prelu_alpha)
        o_ref[...] = y.astype(o_ref.dtype)


def conv2d_pallas(x_nchw, weight, bias, *, stride=1, padding=0, dilation=1,
                  nl="relu", prelu_alpha=0.25, bn_params=None, bn_eps=1e-3,
                  tm_max=1024, force_general=False, vmem_limit_bytes=None):
    """Forward pass of misc/layer.py::Conv2d.

    x_nchw : (N, Cin, H, W)     weight : (Cout, Cin, KH, KW)    bias : (Cout,)
    bn_params: optional (gamma, beta, running_mean, running_var), folded as an
    eval-mode affine transform.
    """
    N, Cin, H, W = x_nchw.shape
    Cout, _, KH, KW = weight.shape
    Ho = (H + 2 * padding - dilation * (KH - 1) - 1) // stride + 1
    Wo = (W + 2 * padding - dilation * (KW - 1) - 1) // stride + 1
    out_dtype = x_nchw.dtype

    cap = _vmem_capacity_bytes()
    if vmem_limit_bytes is None:
        vmem_limit_bytes = int(cap * 0.75)    # ~96 MiB on v5e/v6e, ~48 MiB on v7x
    work_budget = int(cap * 0.45)             # per-step working-set budget

    # ---- fold bias (+ eval-mode BN) into per-channel scale/shift, then fold
    #      the scale into the weights so the in-kernel epilogue is add + NL.
    if bn_params is None:
        s = jnp.ones((Cout,), jnp.float32)
        shift = bias.astype(jnp.float32)
    else:
        gamma, beta, run_mean, run_var = bn_params
        s = gamma.astype(jnp.float32) / jnp.sqrt(run_var.astype(jnp.float32) + bn_eps)
        shift = (s * bias.astype(jnp.float32) + beta.astype(jnp.float32)
                 - s * run_mean.astype(jnp.float32))
    # TODO(synk): training-mode (batch-statistics) BatchNorm and per-channel
    # nn.PReLU parameters are not implemented; eval-mode affine + scalar alpha.

    Coutp = _round_up(Cout, 128)                         # lane-dense channels
    w_f32 = jnp.transpose(weight.astype(jnp.float32), (2, 3, 1, 0)) * s  # (KH,KW,Cin,Cout)
    w_f32 = jnp.pad(w_f32, ((0, 0), (0, 0), (0, 0), (0, Coutp - Cout)))
    shift_p = jnp.pad(shift, (0, Coutp - Cout)).reshape(1, Coutp)

    # TODO(synk): if the surrounding model kept activations NHWC across layers,
    # the NCHW<->NHWC transposes here / on the output could be dropped.
    x_nhwc = jnp.transpose(x_nchw, (0, 2, 3, 1)).astype(jnp.bfloat16)
    xp = jnp.pad(x_nhwc, ((0, 0), (padding, padding), (padding, padding), (0, 0)))
    Hp0, Wp0 = H + 2 * padding, W + 2 * padding
    del Wp0  # (only H/W output extents are needed below)

    # ------------------------- fused path ----------------------------------
    kc = KW * Cin                                 # contraction depth per tap
    Wo_p = _round_up(Wo, 16)                      # bf16 sublane tile = 16 rows
    q_max = ((KH - 1) * dilation) // stride
    Hs = max(_cdiv(Hp0, stride), Ho + q_max)
    fused_vmem = (2 * _padded_bytes((stride, Hs, Wo_p, kc), jnp.bfloat16)   # image (dbl buf)
                  + 2 * _padded_bytes((KH, kc, Coutp), jnp.bfloat16)        # weights
                  + 2 * _padded_bytes((Ho * Wo_p, Coutp), out_dtype)        # output (dbl buf)
                  + _padded_bytes((Ho * Wo_p, Coutp), jnp.float32)          # f32 accumulator
                  + 2 * _padded_bytes((1, Coutp), jnp.float32))             # shift
    use_fused = (not force_general) and fused_vmem <= work_budget

    if use_fused:
        # width-unrolled input (only KW x inflation, strided W handled here):
        #   xw[n, h, wo, kw*Cin + ci] = xp[n, h, wo*stride + kw*dil, ci]
        cols = [xp[:, :, kw * dilation: kw * dilation + stride * (Wo - 1) + 1: stride, :]
                for kw in range(KW)]
        xw = jnp.concatenate(cols, axis=-1)                      # (N, Hp0, Wo, KW*Cin)
        xw = jnp.pad(xw, ((0, 0), (0, Hs * stride - Hp0), (0, Wo_p - Wo), (0, 0)))
        # H-phase split so every kh tap is a contiguous leading-dim slice:
        #   xph[n, p, hs] = xw[n, hs*stride + p]
        xph = xw.reshape(N, Hs, stride, Wo_p, kc).transpose(0, 2, 1, 3, 4)
        w_taps = w_f32.reshape(KH, kc, Coutp).astype(jnp.bfloat16)

        # TODO(synk): tile the fused path over output-row blocks (grid=(N, Ho//th))
        # so v7x's two TensorCores are both used when N == 1 and VMEM stays
        # bounded for large images (those currently take the general path).
        kernel = functools.partial(
            _conv_fused_kernel, KH=KH, dil=dilation, stride=stride,
            Ho=Ho, Wo_p=Wo_p, nl=nl, prelu_alpha=prelu_alpha)
        out = pl.pallas_call(
            kernel,
            out_shape=jax.ShapeDtypeStruct((N, Ho * Wo_p, Coutp), out_dtype),
            grid_spec=pltpu.PrefetchScalarGridSpec(
                num_scalar_prefetch=0,
                grid=(N,),
                in_specs=[
                    pl.BlockSpec((1, stride, Hs, Wo_p, kc),
                                 lambda n: (n, 0, 0, 0, 0)),
                    pl.BlockSpec((KH, kc, Coutp), lambda n: (0, 0, 0)),
                    pl.BlockSpec((1, Coutp), lambda n: (0, 0)),
                ],
                out_specs=pl.BlockSpec((1, Ho * Wo_p, Coutp),
                                       lambda n: (n, 0, 0)),
                scratch_shapes=[pltpu.VMEM((Ho * Wo_p, Coutp), jnp.float32)],
            ),
            compiler_params=pltpu.CompilerParams(
                dimension_semantics=("parallel",),
                vmem_limit_bytes=vmem_limit_bytes),
        )(xph, w_taps, shift_p)
        out = out.reshape(N, Ho, Wo_p, Coutp)[:, :, :Wo, :Cout]
        return jnp.transpose(out, (0, 3, 1, 2)).astype(out_dtype)

    # --------------------- general path: host im2col + tiled matmul ---------
    cols = []
    for kh in range(KH):
        for kw in range(KW):
            h0, w0 = kh * dilation, kw * dilation
            cols.append(xp[:, h0:h0 + stride * (Ho - 1) + 1:stride,
                            w0:w0 + stride * (Wo - 1) + 1:stride, :])
    patches = jnp.concatenate(cols, axis=-1)              # (N, Ho, Wo, KH*KW*Cin)
    K = KH * KW * Cin
    M = N * Ho * Wo
    a = patches.reshape(M, K)
    w_kc = w_f32.reshape(K, Coutp)

    # Contraction tiling: keep K un-padded as one block when it is small (the
    # block dim then equals the full array dim, which is legal); otherwise pad
    # to a 256-multiple so v6e/v7x's 256-deep MXU gets full-depth passes.
    if K <= 2048:
        Kp, tk, num_k = K, K, 1
    else:
        Kp = _round_up(K, 256)
        tk = 512 if Kp % 512 == 0 else 256
        num_k = Kp // tk
        a = jnp.pad(a, ((0, 0), (0, Kp - K)))
        w_kc = jnp.pad(w_kc, ((0, Kp - K), (0, 0)))
    w_kc = w_kc.astype(jnp.bfloat16)

    # Output-channel tile: lane-dense multiple of 128 that divides Coutp.
    if Coutp <= 512:
        tn = Coutp
    elif Coutp % 512 == 0:
        tn = 512
    elif Coutp % 256 == 0:
        tn = 256
    else:
        tn = 128

    # Keep the whole (Kp, tn) weight panel resident in VMEM when small, so it
    # is DMA'd once (its block index never changes within a j panel) instead of
    # being re-streamed for every row block.
    w_resident = (num_k == 1) or (
        2 * _padded_bytes((Kp, tn), jnp.bfloat16) <= work_budget // 4)

    def _gen_vmem(tm_):
        w_bytes = (2 * _padded_bytes((Kp, tn), jnp.bfloat16) if w_resident
                   else 2 * _padded_bytes((tk, tn), jnp.bfloat16))
        return (2 * _padded_bytes((tm_, tk), jnp.bfloat16) + w_bytes
                + 2 * _padded_bytes((tm_, tn), out_dtype)
                + _padded_bytes((tm_, tn), jnp.float32)
                + 2 * _padded_bytes((1, tn), jnp.float32))

    # Row tile: as large as fits the budget (raises arithmetic intensity on the
    # HBM-bound matmul); guarantee >= 2 parallel blocks for small problems so
    # both v7x TensorCores are used.
    tm_cap = min(tm_max, max(8, _round_up(M, 8)))
    tm = None
    for cand in (1024, 512, 256, 128):
        if cand <= tm_cap and _gen_vmem(cand) <= work_budget:
            tm = cand
            break
    if tm is None:
        tm = min(tm_cap, 128)
    if _cdiv(M, tm) == 1 and Coutp // tn == 1 and M > 8:
        tm = _round_up(_cdiv(M, 2), 8)

    Mp = _round_up(M, tm)
    if Mp != M:
        a = jnp.pad(a, ((0, Mp - M), (0, 0)))
    a = a.astype(jnp.bfloat16)

    kernel = functools.partial(_conv_mm_kernel, tk=tk, num_k=num_k,
                               slice_w=(w_resident and num_k > 1),
                               nl=nl, prelu_alpha=prelu_alpha)
    if w_resident:
        w_spec = pl.BlockSpec((Kp, tn), lambda j, i, k: (0, j))
    else:
        w_spec = pl.BlockSpec((tk, tn), lambda j, i, k: (k, j))

    out = pl.pallas_call(
        kernel,
        out_shape=jax.ShapeDtypeStruct((Mp, Coutp), out_dtype),
        grid_spec=pltpu.PrefetchScalarGridSpec(
            num_scalar_prefetch=0,
            # j (output-channel panel) outermost so the resident weight panel is
            # never re-streamed; k (contraction) innermost for the accumulator.
            grid=(Coutp // tn, Mp // tm, num_k),
            in_specs=[
                pl.BlockSpec((tm, tk), lambda j, i, k: (i, k)),   # patches
                w_spec,                                           # weights
                pl.BlockSpec((1, tn), lambda j, i, k: (0, j)),    # shift
            ],
            out_specs=pl.BlockSpec((tm, tn), lambda j, i, k: (i, j)),
            scratch_shapes=[pltpu.VMEM((tm, tn), jnp.float32)],
        ),
        compiler_params=pltpu.CompilerParams(
            dimension_semantics=("parallel", "parallel", "arbitrary"),
            vmem_limit_bytes=vmem_limit_bytes),
    )(a, w_kc, shift_p)

    out = out[:M, :Cout].reshape(N, Ho, Wo, Cout)
    return jnp.transpose(out, (0, 3, 1, 2)).astype(out_dtype)


# ---------------------------------------------------------------------------
# Pure-JAX reference (same bf16 feed + f32 accumulate + folded BN/bias).
# ---------------------------------------------------------------------------
def _reference_forward(x, weight, bias, *, stride, padding, dilation, nl,
                       prelu_alpha=0.25, bn_params=None, bn_eps=1e-3):
    Cout = weight.shape[0]
    if bn_params is None:
        s = jnp.ones((Cout,), jnp.float32)
        shift = bias.astype(jnp.float32)
    else:
        gamma, beta, mean, var = bn_params
        s = gamma / jnp.sqrt(var + bn_eps)
        shift = s * bias + beta - s * mean
    w_f = (weight.astype(jnp.float32) * s[:, None, None, None]).astype(jnp.bfloat16)
    y = jax.lax.conv_general_dilated(
        x.astype(jnp.bfloat16), w_f,
        window_strides=(stride, stride),
        padding=[(padding, padding), (padding, padding)],
        rhs_dilation=(dilation, dilation),
        dimension_numbers=("NCHW", "OIHW", "NCHW"),
        preferred_element_type=jnp.float32)
    y = y + shift[None, :, None, None]
    return _apply_nl(y, nl, prelu_alpha)


if __name__ == "__main__":
    key = jax.random.PRNGKey(0)
    kx, kw, kb, kg, kbt, km, kv = jax.random.split(key, 7)

    in_ch, out_ch, ksz = 4, 8, 3
    x = jax.random.normal(kx, (2, in_ch, 16, 16), jnp.float32)
    fan_in = in_ch * ksz * ksz
    bound = 1.0 / (fan_in ** 0.5)
    weight = jax.random.uniform(kw, (out_ch, in_ch, ksz, ksz),
                                jnp.float32, -bound, bound)
    bias = jax.random.uniform(kb, (out_ch,), jnp.float32, -bound, bound)

    pad = module_padding(ksz, same_padding=True, dilation=1)

    # Config A: Conv2d(4, 8, 3, stride=1, NL='relu', same_padding=True, bn=False)
    # -> fused (in-kernel im2col) path.
    y_a = jax.block_until_ready(
        conv2d_pallas(x, weight, bias, stride=1, padding=pad, dilation=1,
                      nl="relu"))
    ref_a = _reference_forward(x, weight, bias, stride=1, padding=pad,
                               dilation=1, nl="relu")
    assert y_a.shape == ref_a.shape == (2, out_ch, 16, 16)
    assert jnp.allclose(y_a, ref_a, atol=2e-2, rtol=2e-2), \
        float(jnp.max(jnp.abs(y_a - ref_a)))

    # Config B: stride=2 + PReLU + eval-mode BatchNorm -> fused path with the
    # stride handled by the H-phase split (no host im2col).
    gamma = jax.random.uniform(kg, (out_ch,), jnp.float32, 0.5, 1.5)
    beta = jax.random.uniform(kbt, (out_ch,), jnp.float32, -0.5, 0.5)
    run_mean = jax.random.uniform(km, (out_ch,), jnp.float32, -0.5, 0.5)
    run_var = jax.random.uniform(kv, (out_ch,), jnp.float32, 0.5, 1.5)
    bn = (gamma, beta, run_mean, run_var)

    y_b = jax.block_until_ready(
        conv2d_pallas(x, weight, bias, stride=2, padding=pad, dilation=1,
                      nl="prelu", bn_params=bn))
    ref_b = _reference_forward(x, weight, bias, stride=2, padding=pad,
                               dilation=1, nl="prelu", bn_params=bn)
    assert y_b.shape == ref_b.shape == (2, out_ch, 8, 8)
    assert jnp.allclose(y_b, ref_b, atol=2e-2, rtol=2e-2), \
        float(jnp.max(jnp.abs(y_b - ref_b)))

    # Config C: force the tiled-matmul fallback path (used for images whose
    # working set does not fit VMEM) and check it against the same reference.
    y_c = jax.block_until_ready(
        conv2d_pallas(x, weight, bias, stride=1, padding=pad, dilation=1,
                      nl="relu", force_general=True))
    assert y_c.shape == ref_a.shape
    assert jnp.allclose(y_c, ref_a, atol=2e-2, rtol=2e-2), \
        float(jnp.max(jnp.abs(y_c - ref_a)))

    print("KERNEL_OK")
</pallas_src>

<mosaic_0001>
module attributes {stable_mosaic.version = 11 : i64} {
  func.func @_conv_fused_kernel(%arg0: i32, %arg1: memref<1x1x18x16x12xbf16, #tpu.memory_space<vmem>>, %arg2: memref<3x12x128xbf16, #tpu.memory_space<vmem>>, %arg3: memref<1x128xf32, #tpu.memory_space<vmem>>, %arg4: memref<1x256x128xf32, #tpu.memory_space<vmem>>, %arg5: memref<256x128xf32, #tpu.memory_space<vmem>>) attributes {dimension_semantics = [#tpu.dimension_semantics<parallel>], iteration_bounds = array<i64: 2>, scalar_prefetch = 0 : i64, scratch_operands = 1 : i64, tpu.core_type = #tpu.core_type<tc>, window_params = [{transform_indices = @transform_0, window_bounds = array<i64: 1, 1, 18, 16, 12>}, {pipeline_mode = #tpu.pipeline_mode<synchronous>, transform_indices = @transform_1, window_bounds = array<i64: 3, 12, 128>}, {pipeline_mode = #tpu.pipeline_mode<synchronous>, transform_indices = @transform_2, window_bounds = array<i64: 1, 128>}, {transform_indices = @transform_3, window_bounds = array<i64: 1, 256, 128>}]} {
    %c0 = arith.constant 0 : index
    %c0_0 = arith.constant 0 : index
    %c0_1 = arith.constant 0 : index
    %c0_2 = arith.constant 0 : index
    %c0_3 = arith.constant 0 : index
    %0 = vector.load %arg1[%c0, %c0_0, %c0_1, %c0_2, %c0_3] : memref<1x1x18x16x12xbf16, #tpu.memory_space<vmem>>, vector<1x1x16x16x12xbf16>
    %1 = vector.shape_cast %0 : vector<1x1x16x16x12xbf16> to vector<16x16x12xbf16>
    %2 = vector.shape_cast %1 : vector<16x16x12xbf16> to vector<256x12xbf16>
    %c0_4 = arith.constant 0 : index
    %c0_5 = arith.constant 0 : index
    %c0_6 = arith.constant 0 : index
    %3 = vector.load %arg2[%c0_4, %c0_5, %c0_6] : memref<3x12x128xbf16, #tpu.memory_space<vmem>>, vector<1x12x128xbf16>
    %4 = vector.shape_cast %3 : vector<1x12x128xbf16> to vector<12x128xbf16>
    %cst = arith.constant dense<0.000000e+00> : vector<256x128xf32>
    %5 = tpu.matmul %2, %4, %cst {dimension_numbers = #tpu.dot_dimension_numbers<[1], [0], [0], [1], [0, 0, 1, 1], [], []>} : vector<256x12xbf16>, vector<12x128xbf16>, vector<256x128xf32> -> vector<256x128xf32>
    %c0_7 = arith.constant 0 : index
    %c0_8 = arith.constant 0 : index
    %6 = vector.load %arg5[%c0_7, %c0_8] : memref<256x128xf32, #tpu.memory_space<vmem>>, vector<256x128xf32>
    tpu.vector_store %arg5[%c0_7, %c0_8], %5 {strides = array<i32>} : memref<256x128xf32, #tpu.memory_space<vmem>>, vector<256x128xf32>,
    %c0_9 = arith.constant 0 : index
    %c0_10 = arith.constant 0 : index
    %c1 = arith.constant 1 : index
    %c0_11 = arith.constant 0 : index
    %c0_12 = arith.constant 0 : index
    %7 = vector.load %arg1[%c0_9, %c0_10, %c1, %c0_11, %c0_12] : memref<1x1x18x16x12xbf16, #tpu.memory_space<vmem>>, vector<1x1x16x16x12xbf16>
    %8 = vector.shape_cast %7 : vector<1x1x16x16x12xbf16> to vector<16x16x12xbf16>
    %9 = vector.shape_cast %8 : vector<16x16x12xbf16> to vector<256x12xbf16>
    %c1_13 = arith.constant 1 : index
    %c0_14 = arith.constant 0 : index
    %c0_15 = arith.constant 0 : index
    %10 = vector.load %arg2[%c1_13, %c0_14, %c0_15] : memref<3x12x128xbf16, #tpu.memory_space<vmem>>, vector<1x12x128xbf16>
    %11 = vector.shape_cast %10 : vector<1x12x128xbf16> to vector<12x128xbf16>
    %cst_16 = arith.constant dense<0.000000e+00> : vector<256x128xf32>
    %12 = tpu.matmul %9, %11, %cst_16 {dimension_numbers = #tpu.dot_dimension_numbers<[1], [0], [0], [1], [0, 0, 1, 1], [], []>} : vector<256x12xbf16>, vector<12x128xbf16>, vector<256x128xf32> -> vector<256x128xf32>
    %c0_17 = arith.constant 0 : index
    %c0_18 = arith.constant 0 : index
    %13 = vector.load %arg5[%c0_17, %c0_18] : memref<256x128xf32, #tpu.memory_space<vmem>>, vector<256x128xf32>
    %14 = arith.addf %13, %12 : vector<256x128xf32>
    %c0_19 = arith.constant 0 : index
    %c0_20 = arith.constant 0 : index
    %15 = vector.load %arg5[%c0_19, %c0_20] : memref<256x128xf32, #tpu.memory_space<vmem>>, vector<256x128xf32>
    tpu.vector_store %arg5[%c0_19, %c0_20], %14 {strides = array<i32>} : memref<256x128xf32, #tpu.memory_space<vmem>>, vector<256x128xf32>,
    %c0_21 = arith.constant 0 : index
    %c0_22 = arith.constant 0 : index
    %c2 = arith.constant 2 : index
    %c0_23 = arith.constant 0 : index
    %c0_24 = arith.constant 0 : index
    %16 = vector.load %arg1[%c0_21, %c0_22, %c2, %c0_23, %c0_24] : memref<1x1x18x16x12xbf16, #tpu.memory_space<vmem>>, vector<1x1x16x16x12xbf16>
    %17 = vector.shape_cast %16 : vector<1x1x16x16x12xbf16> to vector<16x16x12xbf16>
    %18 = vector.shape_cast %17 : vector<16x16x12xbf16> to vector<256x12xbf16>
    %c2_25 = arith.constant 2 : index
    %c0_26 = arith.constant 0 : index
    %c0_27 = arith.constant 0 : index
    %19 = vector.load %arg2[%c2_25, %c0_26, %c0_27] : memref<3x12x128xbf16, #tpu.memory_space<vmem>>, vector<1x12x128xbf16>
    %20 = vector.shape_cast %19 : vector<1x12x128xbf16> to vector<12x128xbf16>
    %cst_28 = arith.constant dense<0.000000e+00> : vector<256x128xf32>
    %21 = tpu.matmul %18, %20, %cst_28 {dimension_numbers = #tpu.dot_dimension_numbers<[1], [0], [0], [1], [0, 0, 1, 1], [], []>} : vector<256x12xbf16>, vector<12x128xbf16>, vector<256x128xf32> -> vector<256x128xf32>
    %c0_29 = arith.constant 0 : index
    %c0_30 = arith.constant 0 : index
    %22 = vector.load %arg5[%c0_29, %c0_30] : memref<256x128xf32, #tpu.memory_space<vmem>>, vector<256x128xf32>
    %23 = arith.addf %22, %21 : vector<256x128xf32>
    %c0_31 = arith.constant 0 : index
    %c0_32 = arith.constant 0 : index
    %24 = vector.load %arg5[%c0_31, %c0_32] : memref<256x128xf32, #tpu.memory_space<vmem>>, vector<256x128xf32>
    tpu.vector_store %arg5[%c0_31, %c0_32], %23 {strides = array<i32>} : memref<256x128xf32, #tpu.memory_space<vmem>>, vector<256x128xf32>,
    %c0_33 = arith.constant 0 : index
    %c0_34 = arith.constant 0 : index
    %25 = vector.load %arg5[%c0_33, %c0_34] : memref<256x128xf32, #tpu.memory_space<vmem>>, vector<256x128xf32>
    %c0_35 = arith.constant 0 : index
    %c0_36 = arith.constant 0 : index
    %26 = vector.load %arg3[%c0_35, %c0_36] : memref<1x128xf32, #tpu.memory_space<vmem>>, vector<1x128xf32>
    %27 = vector.broadcast %26 : vector<1x128xf32> to vector<256x128xf32>
    %28 = arith.addf %25, %27 : vector<256x128xf32>
    %cst_37 = arith.constant 0.000000e+00 : f32
    %29 = vector.broadcast %cst_37 : f32 to vector<256x128xf32>
    %30 = arith.maximumf %28, %29 : vector<256x128xf32>
    %31 = vector.shape_cast %30 : vector<256x128xf32> to vector<1x256x128xf32>
    %c0_38 = arith.constant 0 : index
    %c0_39 = arith.constant 0 : index
    %c0_40 = arith.constant 0 : index
    %32 = vector.load %arg4[%c0_38, %c0_39, %c0_40] : memref<1x256x128xf32, #tpu.memory_space<vmem>>, vector<1x256x128xf32>
    tpu.vector_store %arg4[%c0_38, %c0_39, %c0_40], %31 {strides = array<i32>} : memref<1x256x128xf32, #tpu.memory_space<vmem>>, vector<1x256x128xf32>,
    return
  }
  func.func @transform_0(%arg0: i32) -> (i32, i32, i32, i32, i32) {
    %c0_i32 = arith.constant 0 : i32
    %c0_i32_0 = arith.constant 0 : i32
    %c0_i32_1 = arith.constant 0 : i32
    %c0_i32_2 = arith.constant 0 : i32
    %c0_i32_3 = arith.constant 0 : i32
    return %arg0, %c0_i32, %c0_i32_0, %c0_i32_1, %c0_i32_2 : i32, i32, i32, i32, i32
  }
  func.func @transform_1(%arg0: i32) -> (i32, i32, i32) {
    %c0_i32 = arith.constant 0 : i32
    %c0_i32_0 = arith.constant 0 : i32
    %c0_i32_1 = arith.constant 0 : i32
    %c0_i32_2 = arith.constant 0 : i32
    return %c0_i32, %c0_i32_0, %c0_i32_1 : i32, i32, i32
  }
  func.func @transform_2(%arg0: i32) -> (i32, i32) {
    %c0_i32 = arith.constant 0 : i32
    %c0_i32_0 = arith.constant 0 : i32
    %c0_i32_1 = arith.constant 0 : i32
    return %c0_i32, %c0_i32_0 : i32, i32
  }
  func.func @transform_3(%arg0: i32) -> (i32, i32, i32) {
    %c0_i32 = arith.constant 0 : i32
    %c0_i32_0 = arith.constant 0 : i32
    %c0_i32_1 = arith.constant 0 : i32
    return %arg0, %c0_i32, %c0_i32_0 : i32, i32, i32
  }
}

</mosaic_0001>

<llo_original>
// kernel: tpu_custom_call.1
$region0: #{tpu_custom_call.1}
  #allocation0 [shape = 'u32[]', space=smem, size = 0x4, offset = 0x4, fixed_abs, tag = 'smem constant byte address 0x4 - core index']
  #allocation1 [shape = 'u32[72,128]{1,0:T(1,128)}', space=vmem, size = 0x9000, scoped, tag = 'internal scratch']
  #allocation2 [shape = 'f32[256,128]{1,0:T(8,128)}', space=vmem, size = 0x20000, scoped, tag = 'scratch operand']
  %s0 = inlined_call_operand.vmem [shape: bf16[2,1,18,16,12], index: 0, kind: input, shape index: {}]
  %s1 = inlined_call_operand.vmem [shape: bf16[3,12,128], index: 1, kind: input, shape index: {}]
  %s2 = inlined_call_operand.vmem [shape: f32[1,128], index: 2, kind: input, shape index: {}]
  %s3 = inlined_call_operand.hbm [shape: f32[2,256,128], index: 3, kind: output, shape index: {}]
  %s4 = sld [smem:[#allocation0]]
  $region45: #{tpu_custom_call.1} parent=0
    _
  %s6 = ssub.s32 1, %s4
  %s7 = scalar_select 0, %s6, %s4
  $region1: #{tpu_custom_call.1} parent=0
    #allocation3 [shape = 'u8[262144]{0}', space=vmem, size = 0x40000, scoped, tag = 'output window, operand 0']
    #allocation4 [shape = 's32[2]{0}', space=sflag, size = 0x8, scoped, tag = 'scoped memory for tpu_custom_call.1']
    %8 = vsyncpa [#allocation4], 0
    %s9 = scalar_lea.sflag [#allocation4], 1
    %10 = vsyncpa %s9, 0
    loop: start=0, step=1, limit=4
    $region2: #{tpu_custom_call.1} parent=1 // loop_pre_header
      _
    $region3: #{tpu_custom_call.1} parent=1 // loop_header
      %s12 = sphi 0, %s16
      %p13 = scmp.ge.s32.totalorder %s12, 4
      %s22 = sphi 0, %s24
      %s25 = sphi 0, %s22
      %s26 = sphi 0, %s25
      %s42 = sphi 0, %s26
      %s46 = sphi 0, %s46
      %s48 = sphi 0, %s46
      %s49 = sphi 0, %s48
      %s63 = sphi 0, %s49
      %s67 = sphi 0, %s67
      %s69 = sphi 0, %s67
      %s70 = sphi 0, %s69
      %s84 = sphi 0, %s70
      %s90 = sphi 0, %s92
      %s93 = sphi 0, %s90
      %s94 = sphi 0, %s93
      %s110 = sphi 0, %s94
    $region4: #{tpu_custom_call.1} parent=1 // loop_header_branch
      %15 = sbr.rel (%p13) target = $region8
    $region5: #{tpu_custom_call.1} parent=1 // loop_body
      %s17 = ssub.s32 %s12, 1
      %s18 = ssub.s32 %s12, 2
      %s19 = sadd.s32 %s12, 1
      %s20 = ssub.s32 %s12, %s19
      %p21 = scmp.eq.s32.totalorder %s20, 0
      %s23 = sadd.s32 %s22, 1
      %s24 = scalar_select %p21, %s22, %s23
      %p27 = pneg %p21
      %p28 = scmp.eq.s32.totalorder %s12, 1
      %p29 = por %p27, %p28
      %p30 = scmp.ne.s32.totalorder %s22, %s25
      %p31 = scmp.eq.s32.totalorder %s12, 0
      %p32 = por %p30, %p31
      %p33 = scmp.ne.s32.totalorder %s22, %s25
      %p34 = scmp.eq.s32.totalorder %s17, 1
      %p35 = por %p33, %p34
      %p36 = scmp.ne.s32.totalorder %s25, %s26
      %p37 = scmp.eq.s32.totalorder %s17, 0
      %p38 = por %p36, %p37
      %p39 = scmp.ne.s32.totalorder %s25, %s26
      %p40 = scmp.eq.s32.totalorder %s18, 1
      %p41 = por %p39, %p40
      %p43 = scmp.ne.s32.totalorder %s26, %s42
      %p44 = scmp.eq.s32.totalorder %s18, 0
      %p45 = por %p43, %p44
      %s47 = sadd.s32 %s46, 1
      %p50 = scmp.eq.s32.totalorder %s12, 1
      %p51 = scmp.ne.s32.totalorder %s46, %s48
      %p52 = scmp.eq.s32.totalorder %s12, 0
      %p53 = por %p51, %p52
      %p54 = scmp.ne.s32.totalorder %s46, %s48
      %p55 = scmp.eq.s32.totalorder %s17, 1
      %p56 = por %p54, %p55
      %p57 = scmp.ne.s32.totalorder %s48, %s49
      %p58 = scmp.eq.s32.totalorder %s17, 0
      %p59 = por %p57, %p58
      %p60 = scmp.ne.s32.totalorder %s48, %s49
      %p61 = scmp.eq.s32.totalorder %s18, 1
      %p62 = por %p60, %p61
      %p64 = scmp.ne.s32.totalorder %s49, %s63
      %p65 = scmp.eq.s32.totalorder %s18, 0
      %p66 = por %p64, %p65
      %s68 = sadd.s32 %s67, 1
      %p71 = scmp.eq.s32.totalorder %s12, 1
      %p72 = scmp.ne.s32.totalorder %s67, %s69
      %p73 = scmp.eq.s32.totalorder %s12, 0
      %p74 = por %p72, %p73
      %p75 = scmp.ne.s32.totalorder %s67, %s69
      %p76 = scmp.eq.s32.totalorder %s17, 1
      %p77 = por %p75, %p76
      %p78 = scmp.ne.s32.totalorder %s69, %s70
      %p79 = scmp.eq.s32.totalorder %s17, 0
      %p80 = por %p78, %p79
      %p81 = scmp.ne.s32.totalorder %s69, %s70
      %p82 = scmp.eq.s32.totalorder %s18, 1
      %p83 = por %p81, %p82
      %p85 = scmp.ne.s32.totalorder %s70, %s84
      %p86 = scmp.eq.s32.totalorder %s18, 0
      %p87 = por %p85, %p86
      %s88 = ssub.s32 %s12, %s19
      %p89 = scmp.eq.s32.totalorder %s88, 0
      %s91 = sadd.s32 %s90, 1
      %s92 = scalar_select %p89, %s90, %s91
      %p95 = pneg %p89
      %p96 = scmp.eq.s32.totalorder %s12, 1
      %p97 = por %p95, %p96
      %p98 = scmp.ne.s32.totalorder %s90, %s93
      %p99 = scmp.eq.s32.totalorder %s12, 0
      %p100 = por %p98, %p99
      %p101 = scmp.ne.s32.totalorder %s90, %s93
      %p102 = scmp.eq.s32.totalorder %s17, 1
      %p103 = por %p101, %p102
      %p104 = scmp.ne.s32.totalorder %s93, %s94
      %p105 = scmp.eq.s32.totalorder %s17, 0
      %p106 = por %p104, %p105
      %p107 = scmp.ne.s32.totalorder %s93, %s94
      %p108 = scmp.eq.s32.totalorder %s18, 1
      %p109 = por %p107, %p108
      %p111 = scmp.ne.s32.totalorder %s94, %s110
      %p112 = scmp.eq.s32.totalorder %s18, 0
      %p113 = por %p111, %p112
      %p114 = scmp.le.s32.totalorder 1, %s12
      %p115 = scmp.lt.s32.totalorder %s12, 3
      %p116 = pnand %p114, %p115
      %p117 = pneg %p116
      // Predicated region
      $region9: #{tpu_custom_call.1} parent=5 // pred_check
        _
      $region10: #{tpu_custom_call.1} parent=5 // pred_check_branch
        %119 = sbr.rel (%p116) target = $region12
      $region11: #{tpu_custom_call.1} parent=5 // pred_region
        %s120 = ssub.s32 %s12, 1
        // Predicated region
        $region13: #{tpu_custom_call.1} parent=11 // pred_check
          %p121 = pneg %p59
        $region14: #{tpu_custom_call.1} parent=11 // pred_check_branch
          %123 = sbr.rel (%p121) target = $region16
        $region15: #{tpu_custom_call.1} parent=11 // pred_region
          _
        $region16: #{tpu_custom_call.1} parent=11 // pred_fallthru
          _
        // Predicated region
        $region17: #{tpu_custom_call.1} parent=11 // pred_check
          %p124 = pneg %p80
        $region18: #{tpu_custom_call.1} parent=11 // pred_check_branch
          %126 = sbr.rel (%p124) target = $region20
        $region19: #{tpu_custom_call.1} parent=11 // pred_region
          _
        $region20: #{tpu_custom_call.1} parent=11 // pred_fallthru
          _
      $region12: #{tpu_custom_call.1} parent=5 // pred_fallthru
        _
      %p127 = scmp.lt.s32.totalorder %s12, 2
      // Predicated region
      $region21: #{tpu_custom_call.1} parent=5 // pred_check
        %p128 = pneg %p127
      $region22: #{tpu_custom_call.1} parent=5 // pred_check_branch
        %130 = sbr.rel (%p128) target = $region24
      $region23: #{tpu_custom_call.1} parent=5 // pred_region
        // Predicated region
        $region25: #{tpu_custom_call.1} parent=23 // pred_check
          %p131 = pneg %p32
        $region26: #{tpu_custom_call.1} parent=23 // pred_check_branch
          %133 = sbr.rel (%p131) target = $region28
        $region27: #{tpu_custom_call.1} parent=23 // pred_region
          %p134 = scmp.lt.s32.totalorder %s12, 1
          %s135 = scalar_select %p134, %s12, 1
          %s136 = smul.addr %s135, 36
          %s137 = smul.addr %s136, 4
          %s138 = scalar_lea.vmem %s0, %s137
        $region28: #{tpu_custom_call.1} parent=23 // pred_fallthru
          _
      $region24: #{tpu_custom_call.1} parent=5 // pred_fallthru
        _
      %p139 = scmp.le.s32.totalorder 1, %s12
      %p140 = scmp.lt.s32.totalorder %s12, 3
      %p141 = pnand %p139, %p140
      %p142 = pneg %p141
      // Predicated region
      $region29: #{tpu_custom_call.1} parent=5 // pred_check
        _
      $region30: #{tpu_custom_call.1} parent=5 // pred_check_branch
        %144 = sbr.rel (%p141) target = $region32
      $region31: #{tpu_custom_call.1} parent=5 // pred_region
        %s145 = ssub.s32 %s12, 1
        %p146 = scmp.lt.s32.totalorder %s17, 1
        %s147 = scalar_select %p146, %s17, 1
        %s148 = smul.addr %s147, 36
        %s149 = smul.addr %s148, 4
        %s150 = scalar_lea.vmem %s0, %s149
        %p151 = pneg %p38
        %p152 = pneg %p35
        %p153 = pneg %p59
        %p154 = pneg %p56
        %p155 = pneg %p80
        %p156 = pneg %p77
        %p157 = pneg %p106
        %p158 = pneg %p103
        %s159 = sand.u32 %s93, 1
        %s160 = scalar_lea.sflag [#allocation4], %s159
        %s161 = sand.u32 %s93, 1
        %s162 = smul.addr %s161, 256
        %s163 = scalar_lea.vmem [#allocation3], %s162
        %p164 = scmp.lt.s32.totalorder %s17, 1
        %s165 = scalar_select %p164, %s17, 1
        %s166 = smul.addr %s165, 36
        %s167 = smul.addr %s166, 4
        %s168 = scalar_lea.vmem %s0, %s167
        %v170 = vld [vmem:[%s168] sm:$0xf]
        %v171 = vld [vmem:[%s168 + $0x4] sm:$0xf]
        %v172 = vld [vmem:[%s168 + $0x8] sm:$0xf]
        %v173 = vld [vmem:[%s168 + $0xc] sm:$0xf]
        %v174 = vld [vmem:[%s168 + $0x10] sm:$0xf]
        %v175 = vld [vmem:[%s168 + $0x14] sm:$0xf]
        %v176 = vld [vmem:[%s168 + $0x18] sm:$0xf]
        %v177 = vld [vmem:[%s168 + $0x1c] sm:$0xf]
        %v178 = vld [vmem:[%s168 + $0x20] sm:$0xf]
        %v179 = vld [vmem:[%s168 + $0x24] sm:$0xf]
        %v180 = vld [vmem:[%s168 + $0x28] sm:$0xf]
        %v181 = vld [vmem:[%s168 + $0x2c] sm:$0xf]
        %v182 = vld [vmem:[%s168 + $0x30] sm:$0xf]
        %v183 = vld [vmem:[%s168 + $0x34] sm:$0xf]
        %v184 = vld [vmem:[%s168 + $0x38] sm:$0xf]
        %v185 = vld [vmem:[%s168 + $0x3c] sm:$0xf]
        %v186 = vld [vmem:[%s168 + $0x40] sm:$0xf]
        %v187 = vld [vmem:[%s168 + $0x44] sm:$0xf]
        %v188 = vld [vmem:[%s168 + $0x48] sm:$0xf]
        %v189 = vld [vmem:[%s168 + $0x4c] sm:$0xf]
        %v190 = vld [vmem:[%s168 + $0x50] sm:$0xf]
        %v191 = vld [vmem:[%s168 + $0x54] sm:$0xf]
        %v192 = vld [vmem:[%s168 + $0x58] sm:$0xf]
        %v193 = vld [vmem:[%s168 + $0x5c] sm:$0xf]
        %v194 = vld [vmem:[%s168 + $0x60] sm:$0xf]
        %v195 = vld [vmem:[%s168 + $0x64] sm:$0xf]
        %v196 = vld [vmem:[%s168 + $0x68] sm:$0xf]
        %v197 = vld [vmem:[%s168 + $0x6c] sm:$0xf]
        %v198 = vld [vmem:[%s168 + $0x70] sm:$0xf]
        %v199 = vld [vmem:[%s168 + $0x74] sm:$0xf]
        %v200 = vld [vmem:[%s168 + $0x78] sm:$0xf]
        %v201 = vld [vmem:[%s168 + $0x7c] sm:$0xf]
        %v202 = vld [vmem:[%s1] sm:$0xf]
        %v203 = vld [vmem:[%s1 + $0x4] sm:$0x3]
        %v236 = vunpack.c.l.b16 %v170
        %v237 = vunpack.c.l.b16 %v171
        %v238 = vunpack.c.l.b16 %v172
        %v239 = vunpack.c.l.b16 %v173
        %v240 = vunpack.c.l.b16 %v174
        %v241 = vunpack.c.l.b16 %v175
        %v242 = vunpack.c.l.b16 %v176
        %v243 = vunpack.c.l.b16 %v177
        %v244 = vunpack.c.l.b16 %v178
        %v245 = vunpack.c.l.b16 %v179
        %v246 = vunpack.c.l.b16 %v180
        %v247 = vunpack.c.l.b16 %v181
        %v248 = vunpack.c.l.b16 %v182
        %v249 = vunpack.c.l.b16 %v183
        %v250 = vunpack.c.l.b16 %v184
        %v251 = vunpack.c.l.b16 %v185
        %v252 = vunpack.c.l.b16 %v186
        %v253 = vunpack.c.l.b16 %v187
        %v254 = vunpack.c.l.b16 %v188
        %v255 = vunpack.c.l.b16 %v189
        %v256 = vunpack.c.l.b16 %v190
        %v257 = vunpack.c.l.b16 %v191
        %v258 = vunpack.c.l.b16 %v192
        %v259 = vunpack.c.l.b16 %v193
        %v260 = vunpack.c.l.b16 %v194
        %v261 = vunpack.c.l.b16 %v195
        %v262 = vunpack.c.l.b16 %v196
        %v263 = vunpack.c.l.b16 %v197
        %v264 = vunpack.c.l.b16 %v198
        %v265 = vunpack.c.l.b16 %v199
        %v266 = vunpack.c.l.b16 %v200
        %v267 = vunpack.c.l.b16 %v201
        %v268 = vpack.c.b16 %v237, %v236
        %v269 = vpack.c.b16 %v239, %v238
        %v270 = vpack.c.b16 %v241, %v240
        %v271 = vpack.c.b16 %v243, %v242
        %v272 = vpack.c.b16 %v245, %v244
        %v273 = vpack.c.b16 %v247, %v246
        %v274 = vpack.c.b16 %v249, %v248
        %v275 = vpack.c.b16 %v251, %v250
        %v276 = vpack.c.b16 %v253, %v252
        %v277 = vpack.c.b16 %v255, %v254
        %v278 = vpack.c.b16 %v257, %v256
        %v279 = vpack.c.b16 %v259, %v258
        %v280 = vpack.c.b16 %v261, %v260
        %v281 = vpack.c.b16 %v263, %v262
        %v282 = vpack.c.b16 %v265, %v264
        %v283 = vpack.c.b16 %v267, %v266
        %v286 = vunpack.c.l.b16 %v202
        %v287 = vunpack.c.l.b16 %v203
        %v288 = vpack.c.b16 %v287, %v286
        %vm289 = vcmask 97280
        %v291 = vsel %vm289, %v268, 0
        %v294 = vsel %vm289, %v269, 0
        %v297 = vsel %vm289, %v270, 0
        %v300 = vsel %vm289, %v271, 0
        %v303 = vsel %vm289, %v272, 0
        %v306 = vsel %vm289, %v273, 0
        %v309 = vsel %vm289, %v274, 0
        %v312 = vsel %vm289, %v275, 0
        %v315 = vsel %vm289, %v276, 0
        %v318 = vsel %vm289, %v277, 0
        %v321 = vsel %vm289, %v278, 0
        %v324 = vsel %vm289, %v279, 0
        %v327 = vsel %vm289, %v280, 0
        %v330 = vsel %vm289, %v281, 0
        %v333 = vsel %vm289, %v282, 0
        %v336 = vsel %vm289, %v283, 0
        %vm338 = vcmask 1045504
        %v340 = vsel %vm338, %v288, 0
        %342 = vmatpush.bf16.msra.mxu0 0
        %343 = vmatpush.bf16.msra.mxu0 0
        %344 = vmatpush.bf16.msra.mxu0 0
        %345 = vmatpush.bf16.msra.mxu0 0
        %346 = vmatpush.bf16.msra.mxu0 0
        %347 = vmatpush.bf16.msra.mxu0 0
        %348 = vmatpush.bf16.msra.mxu0 0
        %349 = vmatpush.bf16.msra.mxu0 %v340
        %350 = vmatmul.bf16.gmra.mxu0 %v291
        %v351 = vpop.f32.mrf.mxu0
        %v352 = vadd.f32 0.0, %v351
        %v353 = vpop.f32.mrf.mxu0
        %v354 = vadd.f32 0.0, %v353
        %355 = vmatmul.bf16.gmra.mxu0 %v294
        %v356 = vpop.f32.mrf.mxu0
        %v357 = vadd.f32 0.0, %v356
        %v358 = vpop.f32.mrf.mxu0
        %v359 = vadd.f32 0.0, %v358
        %360 = vmatmul.bf16.gmra.mxu0 %v297
        %v361 = vpop.f32.mrf.mxu0
        %v362 = vadd.f32 0.0, %v361
        %v363 = vpop.f32.mrf.mxu0
        %v364 = vadd.f32 0.0, %v363
        %365 = vmatmul.bf16.gmra.mxu0 %v300
        %v366 = vpop.f32.mrf.mxu0
        %v367 = vadd.f32 0.0, %v366
        %v368 = vpop.f32.mrf.mxu0
        %v369 = vadd.f32 0.0, %v368
        %370 = vmatmul.bf16.gmra.mxu0 %v303
        %v371 = vpop.f32.mrf.mxu0
        %v372 = vadd.f32 0.0, %v371
        %v373 = vpop.f32.mrf.mxu0
        %v374 = vadd.f32 0.0, %v373
        %375 = vmatmul.bf16.gmra.mxu0 %v306
        %v376 = vpop.f32.mrf.mxu0
        %v377 = vadd.f32 0.0, %v376
        %v378 = vpop.f32.mrf.mxu0
        %v379 = vadd.f32 0.0, %v378
        %380 = vmatmul.bf16.gmra.mxu0 %v309
        %v381 = vpop.f32.mrf.mxu0
        %v382 = vadd.f32 0.0, %v381
        %v383 = vpop.f32.mrf.mxu0
        %v384 = vadd.f32 0.0, %v383
        %385 = vmatmul.bf16.gmra.mxu0 %v312
        %v386 = vpop.f32.mrf.mxu0
        %v387 = vadd.f32 0.0, %v386
        %v388 = vpop.f32.mrf.mxu0
        %v389 = vadd.f32 0.0, %v388
        %390 = vmatmul.bf16.gmra.mxu0 %v315
        %v391 = vpop.f32.mrf.mxu0
        %v392 = vadd.f32 0.0, %v391
        %v393 = vpop.f32.mrf.mxu0
        %v394 = vadd.f32 0.0, %v393
        %395 = vmatmul.bf16.gmra.mxu0 %v318
        %v396 = vpop.f32.mrf.mxu0
        %v397 = vadd.f32 0.0, %v396
        %v398 = vpop.f32.mrf.mxu0
        %v399 = vadd.f32 0.0, %v398
        %400 = vmatmul.bf16.gmra.mxu0 %v321
        %v401 = vpop.f32.mrf.mxu0
        %v402 = vadd.f32 0.0, %v401
        %v403 = vpop.f32.mrf.mxu0
        %v404 = vadd.f32 0.0, %v403
        %405 = vmatmul.bf16.gmra.mxu0 %v324
        %v406 = vpop.f32.mrf.mxu0
        %v407 = vadd.f32 0.0, %v406
        %v408 = vpop.f32.mrf.mxu0
        %v409 = vadd.f32 0.0, %v408
        %410 = vmatmul.bf16.gmra.mxu0 %v327
        %v411 = vpop.f32.mrf.mxu0
        %v412 = vadd.f32 0.0, %v411
        %v413 = vpop.f32.mrf.mxu0
        %v414 = vadd.f32 0.0, %v413
        %415 = vmatmul.bf16.gmra.mxu0 %v330
        %v416 = vpop.f32.mrf.mxu0
        %v417 = vadd.f32 0.0, %v416
        %v418 = vpop.f32.mrf.mxu0
        %v419 = vadd.f32 0.0, %v418
        %420 = vmatmul.bf16.gmra.mxu0 %v333
        %v421 = vpop.f32.mrf.mxu0
        %v422 = vadd.f32 0.0, %v421
        %v423 = vpop.f32.mrf.mxu0
        %v424 = vadd.f32 0.0, %v423
        %425 = vmatmul.bf16.gmra.mxu0 %v336
        %v426 = vpop.f32.mrf.mxu0
        %v427 = vadd.f32 0.0, %v426
        %v428 = vpop.f32.mrf.mxu0
        %v429 = vadd.f32 0.0, %v428
        %430 = vdwg.mxu0
        %431 = vst [vmem:[#allocation2] sm:$0xff] %v352
        %432 = vst [vmem:[#allocation2 + $0x8] sm:$0xff] %v354
        %433 = vst [vmem:[#allocation2 + $0x10] sm:$0xff] %v357
        %434 = vst [vmem:[#allocation2 + $0x18] sm:$0xff] %v359
        %435 = vst [vmem:[#allocation2 + $0x20] sm:$0xff] %v362
        %436 = vst [vmem:[#allocation2 + $0x28] sm:$0xff] %v364
        %437 = vst [vmem:[#allocation2 + $0x30] sm:$0xff] %v367
        %438 = vst [vmem:[#allocation2 + $0x38] sm:$0xff] %v369
        %439 = vst [vmem:[#allocation2 + $0x40] sm:$0xff] %v372
        %440 = vst [vmem:[#allocation2 + $0x48] sm:$0xff] %v374
        %441 = vst [vmem:[#allocation2 + $0x50] sm:$0xff] %v377
        %442 = vst [vmem:[#allocation2 + $0x58] sm:$0xff] %v379
        %443 = vst [vmem:[#allocation2 + $0x60] sm:$0xff] %v382
        %444 = vst [vmem:[#allocation2 + $0x68] sm:$0xff] %v384
        %445 = vst [vmem:[#allocation2 + $0x70] sm:$0xff] %v387
        %446 = vst [vmem:[#allocation2 + $0x78] sm:$0xff] %v389
        %447 = vst [vmem:[#allocation2 + $0x80] sm:$0xff] %v392
        %448 = vst [vmem:[#allocation2 + $0x88] sm:$0xff] %v394
        %449 = vst [vmem:[#allocation2 + $0x90] sm:$0xff] %v397
        %450 = vst [vmem:[#allocation2 + $0x98] sm:$0xff] %v399
        %451 = vst [vmem:[#allocation2 + $0xa0] sm:$0xff] %v402
        %452 = vst [vmem:[#allocation2 + $0xa8] sm:$0xff] %v404
        %453 = vst [vmem:[#allocation2 + $0xb0] sm:$0xff] %v407
        %454 = vst [vmem:[#allocation2 + $0xb8] sm:$0xff] %v409
        %455 = vst [vmem:[#allocation2 + $0xc0] sm:$0xff] %v412
        %456 = vst [vmem:[#allocation2 + $0xc8] sm:$0xff] %v414
        %457 = vst [vmem:[#allocation2 + $0xd0] sm:$0xff] %v417
        %458 = vst [vmem:[#allocation2 + $0xd8] sm:$0xff] %v419
        %459 = vst [vmem:[#allocation2 + $0xe0] sm:$0xff] %v422
        %460 = vst [vmem:[#allocation2 + $0xe8] sm:$0xff] %v424
        %461 = vst [vmem:[#allocation2 + $0xf0] sm:$0xff] %v427
        %462 = vst [vmem:[#allocation2 + $0xf8] sm:$0xff] %v429
        %s463 = scalar_lea.vmem %s168, 8
        %v464 = vld [vmem:[%s463] sm:$0xf]
        %v465 = vld [vmem:[%s463 + $0x4] sm:$0xf]
        %v466 = vld [vmem:[%s463 + $0x8] sm:$0xf]
        %v467 = vld [vmem:[%s463 + $0xc] sm:$0xf]
        %v468 = vld [vmem:[%s463 + $0x10] sm:$0xf]
        %v469 = vld [vmem:[%s463 + $0x14] sm:$0xf]
        %v470 = vld [vmem:[%s463 + $0x18] sm:$0xf]
        %v471 = vld [vmem:[%s463 + $0x1c] sm:$0xf]
        %v472 = vld [vmem:[%s463 + $0x20] sm:$0xf]
        %v473 = vld [vmem:[%s463 + $0x24] sm:$0xf]
        %v474 = vld [vmem:[%s463 + $0x28] sm:$0xf]
        %v475 = vld [vmem:[%s463 + $0x2c] sm:$0xf]
        %v476 = vld [vmem:[%s463 + $0x30] sm:$0xf]
        %v477 = vld [vmem:[%s463 + $0x34] sm:$0xf]
        %v478 = vld [vmem:[%s463 + $0x38] sm:$0xf]
        %v479 = vld [vmem:[%s463 + $0x3c] sm:$0xf]
        %v480 = vld [vmem:[%s463 + $0x40] sm:$0xf]
        %v481 = vld [vmem:[%s463 + $0x44] sm:$0xf]
        %v482 = vld [vmem:[%s463 + $0x48] sm:$0xf]
        %v483 = vld [vmem:[%s463 + $0x4c] sm:$0xf]
        %v484 = vld [vmem:[%s463 + $0x50] sm:$0xf]
        %v485 = vld [vmem:[%s463 + $0x54] sm:$0xf]
        %v486 = vld [vmem:[%s463 + $0x58] sm:$0xf]
        %v487 = vld [vmem:[%s463 + $0x5c] sm:$0xf]
        %v488 = vld [vmem:[%s463 + $0x60] sm:$0xf]
        %v489 = vld [vmem:[%s463 + $0x64] sm:$0xf]
        %v490 = vld [vmem:[%s463 + $0x68] sm:$0xf]
        %v491 = vld [vmem:[%s463 + $0x6c] sm:$0xf]
        %v492 = vld [vmem:[%s463 + $0x70] sm:$0xf]
        %v493 = vld [vmem:[%s463 + $0x74] sm:$0xf]
        %v494 = vld [vmem:[%s463 + $0x78] sm:$0xf]
        %v495 = vld [vmem:[%s463 + $0x7c] sm:$0xf]
        %s496 = scalar_lea.vmem %s1, 8
        %v497 = vld [vmem:[%s496] sm:$0xf]
        %v498 = vld [vmem:[%s496 + $0x4] sm:$0x3]
        %v531 = vunpack.c.l.b16 %v464
        %v532 = vunpack.c.l.b16 %v465
        %v533 = vunpack.c.l.b16 %v466
        %v534 = vunpack.c.l.b16 %v467
        %v535 = vunpack.c.l.b16 %v468
        %v536 = vunpack.c.l.b16 %v469
        %v537 = vunpack.c.l.b16 %v470
        %v538 = vunpack.c.l.b16 %v471
        %v539 = vunpack.c.l.b16 %v472
        %v540 = vunpack.c.l.b16 %v473
        %v541 = vunpack.c.l.b16 %v474
        %v542 = vunpack.c.l.b16 %v475
        %v543 = vunpack.c.l.b16 %v476
        %v544 = vunpack.c.l.b16 %v477
        %v545 = vunpack.c.l.b16 %v478
        %v546 = vunpack.c.l.b16 %v479
        %v547 = vunpack.c.l.b16 %v480
        %v548 = vunpack.c.l.b16 %v481
        %v549 = vunpack.c.l.b16 %v482
        %v550 = vunpack.c.l.b16 %v483
        %v551 = vunpack.c.l.b16 %v484
        %v552 = vunpack.c.l.b16 %v485
        %v553 = vunpack.c.l.b16 %v486
        %v554 = vunpack.c.l.b16 %v487
        %v555 = vunpack.c.l.b16 %v488
        %v556 = vunpack.c.l.b16 %v489
        %v557 = vunpack.c.l.b16 %v490
        %v558 = vunpack.c.l.b16 %v491
        %v559 = vunpack.c.l.b16 %v492
        %v560 = vunpack.c.l.b16 %v493
        %v561 = vunpack.c.l.b16 %v494
        %v562 = vunpack.c.l.b16 %v495
        %v563 = vpack.c.b16 %v532, %v531
        %v564 = vpack.c.b16 %v534, %v533
        %v565 = vpack.c.b16 %v536, %v535
        %v566 = vpack.c.b16 %v538, %v537
        %v567 = vpack.c.b16 %v540, %v539
        %v568 = vpack.c.b16 %v542, %v541
        %v569 = vpack.c.b16 %v544, %v543
        %v570 = vpack.c.b16 %v546, %v545
        %v571 = vpack.c.b16 %v548, %v547
        %v572 = vpack.c.b16 %v550, %v549
        %v573 = vpack.c.b16 %v552, %v551
        %v574 = vpack.c.b16 %v554, %v553
        %v575 = vpack.c.b16 %v556, %v555
        %v576 = vpack.c.b16 %v558, %v557
        %v577 = vpack.c.b16 %v560, %v559
        %v578 = vpack.c.b16 %v562, %v561
        %v581 = vunpack.c.l.b16 %v497
        %v582 = vunpack.c.l.b16 %v498
        %v583 = vpack.c.b16 %v582, %v581
        %v585 = vsel %vm289, %v563, 0
        %v588 = vsel %vm289, %v564, 0
        %v591 = vsel %vm289, %v565, 0
        %v594 = vsel %vm289, %v566, 0
        %v597 = vsel %vm289, %v567, 0
        %v600 = vsel %vm289, %v568, 0
        %v603 = vsel %vm289, %v569, 0
        %v606 = vsel %vm289, %v570, 0
        %v609 = vsel %vm289, %v571, 0
        %v612 = vsel %vm289, %v572, 0
        %v615 = vsel %vm289, %v573, 0
        %v618 = vsel %vm289, %v574, 0
        %v621 = vsel %vm289, %v575, 0
        %v624 = vsel %vm289, %v576, 0
        %v627 = vsel %vm289, %v577, 0
        %v630 = vsel %vm289, %v578, 0
        %v633 = vsel %vm338, %v583, 0
        %635 = vmatpush.bf16.msra.mxu0 0
        %636 = vmatpush.bf16.msra.mxu0 0
        %637 = vmatpush.bf16.msra.mxu0 0
        %638 = vmatpush.bf16.msra.mxu0 0
        %639 = vmatpush.bf16.msra.mxu0 0
        %640 = vmatpush.bf16.msra.mxu0 0
        %641 = vmatpush.bf16.msra.mxu0 0
        %642 = vmatpush.bf16.msra.mxu0 %v633
        %643 = vmatmul.bf16.gmra.mxu0 %v585
        %v644 = vpop.f32.mrf.mxu0
        %v645 = vadd.f32 0.0, %v644
        %v646 = vpop.f32.mrf.mxu0
        %v647 = vadd.f32 0.0, %v646
        %648 = vmatmul.bf16.gmra.mxu0 %v588
        %v649 = vpop.f32.mrf.mxu0
        %v650 = vadd.f32 0.0, %v649
        %v651 = vpop.f32.mrf.mxu0
        %v652 = vadd.f32 0.0, %v651
        %653 = vmatmul.bf16.gmra.mxu0 %v591
        %v654 = vpop.f32.mrf.mxu0
        %v655 = vadd.f32 0.0, %v654
        %v656 = vpop.f32.mrf.mxu0
        %v657 = vadd.f32 0.0, %v656
        %658 = vmatmul.bf16.gmra.mxu0 %v594
        %v659 = vpop.f32.mrf.mxu0
        %v660 = vadd.f32 0.0, %v659
        %v661 = vpop.f32.mrf.mxu0
        %v662 = vadd.f32 0.0, %v661
        %663 = vmatmul.bf16.gmra.mxu0 %v597
        %v664 = vpop.f32.mrf.mxu0
        %v665 = vadd.f32 0.0, %v664
        %v666 = vpop.f32.mrf.mxu0
        %v667 = vadd.f32 0.0, %v666
        %668 = vmatmul.bf16.gmra.mxu0 %v600
        %v669 = vpop.f32.mrf.mxu0
        %v670 = vadd.f32 0.0, %v669
        %v671 = vpop.f32.mrf.mxu0
        %v672 = vadd.f32 0.0, %v671
        %673 = vmatmul.bf16.gmra.mxu0 %v603
        %v674 = vpop.f32.mrf.mxu0
        %v675 = vadd.f32 0.0, %v674
        %v676 = vpop.f32.mrf.mxu0
        %v677 = vadd.f32 0.0, %v676
        %678 = vmatmul.bf16.gmra.mxu0 %v606
        %v679 = vpop.f32.mrf.mxu0
        %v680 = vadd.f32 0.0, %v679
        %v681 = vpop.f32.mrf.mxu0
        %v682 = vadd.f32 0.0, %v681
        %683 = vmatmul.bf16.gmra.mxu0 %v609
        %v684 = vpop.f32.mrf.mxu0
        %v685 = vadd.f32 0.0, %v684
        %v686 = vpop.f32.mrf.mxu0
        %v687 = vadd.f32 0.0, %v686
        %688 = vmatmul.bf16.gmra.mxu0 %v612
        %v689 = vpop.f32.mrf.mxu0
        %v690 = vadd.f32 0.0, %v689
        %v691 = vpop.f32.mrf.mxu0
        %v692 = vadd.f32 0.0, %v691
        %693 = vmatmul.bf16.gmra.mxu0 %v615
        %v694 = vpop.f32.mrf.mxu0
        %v695 = vadd.f32 0.0, %v694
        %v696 = vpop.f32.mrf.mxu0
        %v697 = vadd.f32 0.0, %v696
        %698 = vmatmul.bf16.gmra.mxu0 %v618
        %v699 = vpop.f32.mrf.mxu0
        %v700 = vadd.f32 0.0, %v699
        %v701 = vpop.f32.mrf.mxu0
        %v702 = vadd.f32 0.0, %v701
        %703 = vmatmul.bf16.gmra.mxu0 %v621
        %v704 = vpop.f32.mrf.mxu0
        %v705 = vadd.f32 0.0, %v704
        %v706 = vpop.f32.mrf.mxu0
        %v707 = vadd.f32 0.0, %v706
        %708 = vmatmul.bf16.gmra.mxu0 %v624
        %v709 = vpop.f32.mrf.mxu0
        %v710 = vadd.f32 0.0, %v709
        %v711 = vpop.f32.mrf.mxu0
        %v712 = vadd.f32 0.0, %v711
        %713 = vmatmul.bf16.gmra.mxu0 %v627
        %v714 = vpop.f32.mrf.mxu0
        %v715 = vadd.f32 0.0, %v714
        %v716 = vpop.f32.mrf.mxu0
        %v717 = vadd.f32 0.0, %v716
        %718 = vmatmul.bf16.gmra.mxu0 %v630
        %v719 = vpop.f32.mrf.mxu0
        %v720 = vadd.f32 0.0, %v719
        %v721 = vpop.f32.mrf.mxu0
        %v722 = vadd.f32 0.0, %v721
        %723 = vdwg.mxu0
        %v724 = vld [vmem:[#allocation2] sm:$0xff]
        %v725 = vld [vmem:[#allocation2 + $0x8] sm:$0xff]
        %v726 = vld [vmem:[#allocation2 + $0x10] sm:$0xff]
        %v727 = vld [vmem:[#allocation2 + $0x18] sm:$0xff]
        %v728 = vld [vmem:[#allocation2 + $0x20] sm:$0xff]
        %v729 = vld [vmem:[#allocation2 + $0x28] sm:$0xff]
        %v730 = vld [vmem:[#allocation2 + $0x30] sm:$0xff]
        %v731 = vld [vmem:[#allocation2 + $0x38] sm:$0xff]
        %v732 = vld [vmem:[#allocation2 + $0x40] sm:$0xff]
        %v733 = vld [vmem:[#allocation2 + $0x48] sm:$0xff]
        %v734 = vld [vmem:[#allocation2 + $0x50] sm:$0xff]
        %v735 = vld [vmem:[#allocation2 + $0x58] sm:$0xff]
        %v736 = vld [vmem:[#allocation2 + $0x60] sm:$0xff]
        %v737 = vld [vmem:[#allocation2 + $0x68] sm:$0xff]
        %v738 = vld [vmem:[#allocation2 + $0x70] sm:$0xff]
        %v739 = vld [vmem:[#allocation2 + $0x78] sm:$0xff]
        %v740 = vld [vmem:[#allocation2 + $0x80] sm:$0xff]
        %v741 = vld [vmem:[#allocation2 + $0x88] sm:$0xff]
        %v742 = vld [vmem:[#allocation2 + $0x90] sm:$0xff]
        %v743 = vld [vmem:[#allocation2 + $0x98] sm:$0xff]
        %v744 = vld [vmem:[#allocation2 + $0xa0] sm:$0xff]
        %v745 = vld [vmem:[#allocation2 + $0xa8] sm:$0xff]
        %v746 = vld [vmem:[#allocation2 + $0xb0] sm:$0xff]
        %v747 = vld [vmem:[#allocation2 + $0xb8] sm:$0xff]
        %v748 = vld [vmem:[#allocation2 + $0xc0] sm:$0xff]
        %v749 = vld [vmem:[#allocation2 + $0xc8] sm:$0xff]
        %v750 = vld [vmem:[#allocation2 + $0xd0] sm:$0xff]
        %v751 = vld [vmem:[#allocation2 + $0xd8] sm:$0xff]
        %v752 = vld [vmem:[#allocation2 + $0xe0] sm:$0xff]
        %v753 = vld [vmem:[#allocation2 + $0xe8] sm:$0xff]
        %v754 = vld [vmem:[#allocation2 + $0xf0] sm:$0xff]
        %v755 = vld [vmem:[#allocation2 + $0xf8] sm:$0xff]
        %v756 = vadd.f32 %v724, %v645
        %v757 = vadd.f32 %v725, %v647
        %v758 = vadd.f32 %v726, %v650
        %v759 = vadd.f32 %v727, %v652
        %v760 = vadd.f32 %v728, %v655
        %v761 = vadd.f32 %v729, %v657
        %v762 = vadd.f32 %v730, %v660
        %v763 = vadd.f32 %v731, %v662
        %v764 = vadd.f32 %v732, %v665
        %v765 = vadd.f32 %v733, %v667
        %v766 = vadd.f32 %v734, %v670
        %v767 = vadd.f32 %v735, %v672
        %v768 = vadd.f32 %v736, %v675
        %v769 = vadd.f32 %v737, %v677
        %v770 = vadd.f32 %v738, %v680
        %v771 = vadd.f32 %v739, %v682
        %v772 = vadd.f32 %v740, %v685
        %v773 = vadd.f32 %v741, %v687
        %v774 = vadd.f32 %v742, %v690
        %v775 = vadd.f32 %v743, %v692
        %v776 = vadd.f32 %v744, %v695
        %v777 = vadd.f32 %v745, %v697
        %v778 = vadd.f32 %v746, %v700
        %v779 = vadd.f32 %v747, %v702
        %v780 = vadd.f32 %v748, %v705
        %v781 = vadd.f32 %v749, %v707
        %v782 = vadd.f32 %v750, %v710
        %v783 = vadd.f32 %v751, %v712
        %v784 = vadd.f32 %v752, %v715
        %v785 = vadd.f32 %v753, %v717
        %v786 = vadd.f32 %v754, %v720
        %v787 = vadd.f32 %v755, %v722
        %788 = vst [vmem:[#allocation2] sm:$0xff] %v756
        %789 = vst [vmem:[#allocation2 + $0x8] sm:$0xff] %v757
        %790 = vst [vmem:[#allocation2 + $0x10] sm:$0xff] %v758
        %791 = vst [vmem:[#allocation2 + $0x18] sm:$0xff] %v759
        %792 = vst [vmem:[#allocation2 + $0x20] sm:$0xff] %v760
        %793 = vst [vmem:[#allocation2 + $0x28] sm:$0xff] %v761
        %794 = vst [vmem:[#allocation2 + $0x30] sm:$0xff] %v762
        %795 = vst [vmem:[#allocation2 + $0x38] sm:$0xff] %v763
        %796 = vst [vmem:[#allocation2 + $0x40] sm:$0xff] %v764
        %797 = vst [vmem:[#allocation2 + $0x48] sm:$0xff] %v765
        %798 = vst [vmem:[#allocation2 + $0x50] sm:$0xff] %v766
        %799 = vst [vmem:[#allocation2 + $0x58] sm:$0xff] %v767
        %800 = vst [vmem:[#allocation2 + $0x60] sm:$0xff] %v768
        %801 = vst [vmem:[#allocation2 + $0x68] sm:$0xff] %v769
        %802 = vst [vmem:[#allocation2 + $0x70] sm:$0xff] %v770
        %803 = vst [vmem:[#allocation2 + $0x78] sm:$0xff] %v771
        %804 = vst [vmem:[#allocation2 + $0x80] sm:$0xff] %v772
        %805 = vst [vmem:[#allocation2 + $0x88] sm:$0xff] %v773
        %806 = vst [vmem:[#allocation2 + $0x90] sm:$0xff] %v774
        %807 = vst [vmem:[#allocation2 + $0x98] sm:$0xff] %v775
        %808 = vst [vmem:[#allocation2 + $0xa0] sm:$0xff] %v776
        %809 = vst [vmem:[#allocation2 + $0xa8] sm:$0xff] %v777
        %810 = vst [vmem:[#allocation2 + $0xb0] sm:$0xff] %v778
        %811 = vst [vmem:[#allocation2 + $0xb8] sm:$0xff] %v779
        %812 = vst [vmem:[#allocation2 + $0xc0] sm:$0xff] %v780
        %813 = vst [vmem:[#allocation2 + $0xc8] sm:$0xff] %v781
        %814 = vst [vmem:[#allocation2 + $0xd0] sm:$0xff] %v782
        %815 = vst [vmem:[#allocation2 + $0xd8] sm:$0xff] %v783
        %816 = vst [vmem:[#allocation2 + $0xe0] sm:$0xff] %v784
        %817 = vst [vmem:[#allocation2 + $0xe8] sm:$0xff] %v785
        %818 = vst [vmem:[#allocation2 + $0xf0] sm:$0xff] %v786
        %819 = vst [vmem:[#allocation2 + $0xf8] sm:$0xff] %v787
        %s820 = scalar_lea.vmem %s168, 16
        %v821 = vld [vmem:[%s820] sm:$0xf]
        %v822 = vld [vmem:[%s820 + $0x4] sm:$0xf]
        %v823 = vld [vmem:[%s820 + $0x8] sm:$0xf]
        %v824 = vld [vmem:[%s820 + $0xc] sm:$0xf]
        %v825 = vld [vmem:[%s820 + $0x10] sm:$0xf]
        %v826 = vld [vmem:[%s820 + $0x14] sm:$0xf]
        %v827 = vld [vmem:[%s820 + $0x18] sm:$0xf]
        %v828 = vld [vmem:[%s820 + $0x1c] sm:$0xf]
        %v829 = vld [vmem:[%s820 + $0x20] sm:$0xf]
        %v830 = vld [vmem:[%s820 + $0x24] sm:$0xf]
        %v831 = vld [vmem:[%s820 + $0x28] sm:$0xf]
        %v832 = vld [vmem:[%s820 + $0x2c] sm:$0xf]
        %v833 = vld [vmem:[%s820 + $0x30] sm:$0xf]
        %v834 = vld [vmem:[%s820 + $0x34] sm:$0xf]
        %v835 = vld [vmem:[%s820 + $0x38] sm:$0xf]
        %v836 = vld [vmem:[%s820 + $0x3c] sm:$0xf]
        %v837 = vld [vmem:[%s820 + $0x40] sm:$0xf]
        %v838 = vld [vmem:[%s820 + $0x44] sm:$0xf]
        %v839 = vld [vmem:[%s820 + $0x48] sm:$0xf]
        %v840 = vld [vmem:[%s820 + $0x4c] sm:$0xf]
        %v841 = vld [vmem:[%s820 + $0x50] sm:$0xf]
        %v842 = vld [vmem:[%s820 + $0x54] sm:$0xf]
        %v843 = vld [vmem:[%s820 + $0x58] sm:$0xf]
        %v844 = vld [vmem:[%s820 + $0x5c] sm:$0xf]
        %v845 = vld [vmem:[%s820 + $0x60] sm:$0xf]
        %v846 = vld [vmem:[%s820 + $0x64] sm:$0xf]
        %v847 = vld [vmem:[%s820 + $0x68] sm:$0xf]
        %v848 = vld [vmem:[%s820 + $0x6c] sm:$0xf]
        %v849 = vld [vmem:[%s820 + $0x70] sm:$0xf]
        %v850 = vld [vmem:[%s820 + $0x74] sm:$0xf]
        %v851 = vld [vmem:[%s820 + $0x78] sm:$0xf]
        %v852 = vld [vmem:[%s820 + $0x7c] sm:$0xf]
        %s853 = scalar_lea.vmem %s1, 16
        %v854 = vld [vmem:[%s853] sm:$0xf]
        %v855 = vld [vmem:[%s853 + $0x4] sm:$0x3]
        %v888 = vunpack.c.l.b16 %v821
        %v889 = vunpack.c.l.b16 %v822
        %v890 = vunpack.c.l.b16 %v823
        %v891 = vunpack.c.l.b16 %v824
        %v892 = vunpack.c.l.b16 %v825
        %v893 = vunpack.c.l.b16 %v826
        %v894 = vunpack.c.l.b16 %v827
        %v895 = vunpack.c.l.b16 %v828
        %v896 = vunpack.c.l.b16 %v829
        %v897 = vunpack.c.l.b16 %v830
        %v898 = vunpack.c.l.b16 %v831
        %v899 = vunpack.c.l.b16 %v832
        %v900 = vunpack.c.l.b16 %v833
        %v901 = vunpack.c.l.b16 %v834
        %v902 = vunpack.c.l.b16 %v835
        %v903 = vunpack.c.l.b16 %v836
        %v904 = vunpack.c.l.b16 %v837
        %v905 = vunpack.c.l.b16 %v838
        %v906 = vunpack.c.l.b16 %v839
        %v907 = vunpack.c.l.b16 %v840
        %v908 = vunpack.c.l.b16 %v841
        %v909 = vunpack.c.l.b16 %v842
        %v910 = vunpack.c.l.b16 %v843
        %v911 = vunpack.c.l.b16 %v844
        %v912 = vunpack.c.l.b16 %v845
        %v913 = vunpack.c.l.b16 %v846
        %v914 = vunpack.c.l.b16 %v847
        %v915 = vunpack.c.l.b16 %v848
        %v916 = vunpack.c.l.b16 %v849
        %v917 = vunpack.c.l.b16 %v850
        %v918 = vunpack.c.l.b16 %v851
        %v919 = vunpack.c.l.b16 %v852
        %v920 = vpack.c.b16 %v889, %v888
        %v921 = vpack.c.b16 %v891, %v890
        %v922 = vpack.c.b16 %v893, %v892
        %v923 = vpack.c.b16 %v895, %v894
        %v924 = vpack.c.b16 %v897, %v896
        %v925 = vpack.c.b16 %v899, %v898
        %v926 = vpack.c.b16 %v901, %v900
        %v927 = vpack.c.b16 %v903, %v902
        %v928 = vpack.c.b16 %v905, %v904
        %v929 = vpack.c.b16 %v907, %v906
        %v930 = vpack.c.b16 %v909, %v908
        %v931 = vpack.c.b16 %v911, %v910
        %v932 = vpack.c.b16 %v913, %v912
        %v933 = vpack.c.b16 %v915, %v914
        %v934 = vpack.c.b16 %v917, %v916
        %v935 = vpack.c.b16 %v919, %v918
        %v938 = vunpack.c.l.b16 %v854
        %v939 = vunpack.c.l.b16 %v855
        %v940 = vpack.c.b16 %v939, %v938
        %v942 = vsel %vm289, %v920, 0
        %v945 = vsel %vm289, %v921, 0
        %v948 = vsel %vm289, %v922, 0
        %v951 = vsel %vm289, %v923, 0
        %v954 = vsel %vm289, %v924, 0
        %v957 = vsel %vm289, %v925, 0
        %v960 = vsel %vm289, %v926, 0
        %v963 = vsel %vm289, %v927, 0
        %v966 = vsel %vm289, %v928, 0
        %v969 = vsel %vm289, %v929, 0
        %v972 = vsel %vm289, %v930, 0
        %v975 = vsel %vm289, %v931, 0
        %v978 = vsel %vm289, %v932, 0
        %v981 = vsel %vm289, %v933, 0
        %v984 = vsel %vm289, %v934, 0
        %v987 = vsel %vm289, %v935, 0
        %v990 = vsel %vm338, %v940, 0
        %992 = vmatpush.bf16.msra.mxu0 0
        %993 = vmatpush.bf16.msra.mxu0 0
        %994 = vmatpush.bf16.msra.mxu0 0
        %995 = vmatpush.bf16.msra.mxu0 0
        %996 = vmatpush.bf16.msra.mxu0 0
        %997 = vmatpush.bf16.msra.mxu0 0
        %998 = vmatpush.bf16.msra.mxu0 0
        %999 = vmatpush.bf16.msra.mxu0 %v990
        %1000 = vmatmul.bf16.gmra.mxu0 %v942
        %v1001 = vpop.f32.mrf.mxu0
        %v1002 = vadd.f32 0.0, %v1001
        %v1003 = vpop.f32.mrf.mxu0
        %v1004 = vadd.f32 0.0, %v1003
        %1005 = vmatmul.bf16.gmra.mxu0 %v945
        %v1006 = vpop.f32.mrf.mxu0
        %v1007 = vadd.f32 0.0, %v1006
        %v1008 = vpop.f32.mrf.mxu0
        %v1009 = vadd.f32 0.0, %v1008
        %1010 = vmatmul.bf16.gmra.mxu0 %v948
        %v1011 = vpop.f32.mrf.mxu0
        %v1012 = vadd.f32 0.0, %v1011
        %v1013 = vpop.f32.mrf.mxu0
        %v1014 = vadd.f32 0.0, %v1013
        %1015 = vmatmul.bf16.gmra.mxu0 %v951
        %v1016 = vpop.f32.mrf.mxu0
        %v1017 = vadd.f32 0.0, %v1016
        %v1018 = vpop.f32.mrf.mxu0
        %v1019 = vadd.f32 0.0, %v1018
        %1020 = vmatmul.bf16.gmra.mxu0 %v954
        %v1021 = vpop.f32.mrf.mxu0
        %v1022 = vadd.f32 0.0, %v1021
        %v1023 = vpop.f32.mrf.mxu0
        %v1024 = vadd.f32 0.0, %v1023
        %1025 = vmatmul.bf16.gmra.mxu0 %v957
        %v1026 = vpop.f32.mrf.mxu0
        %v1027 = vadd.f32 0.0, %v1026
        %v1028 = vpop.f32.mrf.mxu0
        %v1029 = vadd.f32 0.0, %v1028
        %1030 = vmatmul.bf16.gmra.mxu0 %v960
        %v1031 = vpop.f32.mrf.mxu0
        %v1032 = vadd.f32 0.0, %v1031
        %v1033 = vpop.f32.mrf.mxu0
        %v1034 = vadd.f32 0.0, %v1033
        %1035 = vmatmul.bf16.gmra.mxu0 %v963
        %v1036 = vpop.f32.mrf.mxu0
        %v1037 = vadd.f32 0.0, %v1036
        %v1038 = vpop.f32.mrf.mxu0
        %v1039 = vadd.f32 0.0, %v1038
        %1040 = vmatmul.bf16.gmra.mxu0 %v966
        %v1041 = vpop.f32.mrf.mxu0
        %v1042 = vadd.f32 0.0, %v1041
        %v1043 = vpop.f32.mrf.mxu0
        %v1044 = vadd.f32 0.0, %v1043
        %1045 = vmatmul.bf16.gmra.mxu0 %v969
        %v1046 = vpop.f32.mrf.mxu0
        %v1047 = vadd.f32 0.0, %v1046
        %v1048 = vpop.f32.mrf.mxu0
        %v1049 = vadd.f32 0.0, %v1048
        %1050 = vmatmul.bf16.gmra.mxu0 %v972
        %v1051 = vpop.f32.mrf.mxu0
        %v1052 = vadd.f32 0.0, %v1051
        %v1053 = vpop.f32.mrf.mxu0
        %v1054 = vadd.f32 0.0, %v1053
        %1055 = vmatmul.bf16.gmra.mxu0 %v975
        %v1056 = vpop.f32.mrf.mxu0
        %v1057 = vadd.f32 0.0, %v1056
        %v1058 = vpop.f32.mrf.mxu0
        %v1059 = vadd.f32 0.0, %v1058
        %1060 = vmatmul.bf16.gmra.mxu0 %v978
        %v1061 = vpop.f32.mrf.mxu0
        %v1062 = vadd.f32 0.0, %v1061
        %v1063 = vpop.f32.mrf.mxu0
        %v1064 = vadd.f32 0.0, %v1063
        %1065 = vmatmul.bf16.gmra.mxu0 %v981
        %v1066 = vpop.f32.mrf.mxu0
        %v1067 = vadd.f32 0.0, %v1066
        %v1068 = vpop.f32.mrf.mxu0
        %v1069 = vadd.f32 0.0, %v1068
        %1070 = vmatmul.bf16.gmra.mxu0 %v984
        %v1071 = vpop.f32.mrf.mxu0
        %v1072 = vadd.f32 0.0, %v1071
        %v1073 = vpop.f32.mrf.mxu0
        %v1074 = vadd.f32 0.0, %v1073
        %1075 = vmatmul.bf16.gmra.mxu0 %v987
        %v1076 = vpop.f32.mrf.mxu0
        %v1077 = vadd.f32 0.0, %v1076
        %v1078 = vpop.f32.mrf.mxu0
        %v1079 = vadd.f32 0.0, %v1078
        %1080 = vdwg.mxu0
        %v1081 = vld [vmem:[#allocation2] sm:$0xff]
        %v1082 = vld [vmem:[#allocation2 + $0x8] sm:$0xff]
        %v1083 = vld [vmem:[#allocation2 + $0x10] sm:$0xff]
        %v1084 = vld [vmem:[#allocation2 + $0x18] sm:$0xff]
        %v1085 = vld [vmem:[#allocation2 + $0x20] sm:$0xff]
        %v1086 = vld [vmem:[#allocation2 + $0x28] sm:$0xff]
        %v1087 = vld [vmem:[#allocation2 + $0x30] sm:$0xff]
        %v1088 = vld [vmem:[#allocation2 + $0x38] sm:$0xff]
        %v1089 = vld [vmem:[#allocation2 + $0x40] sm:$0xff]
        %v1090 = vld [vmem:[#allocation2 + $0x48] sm:$0xff]
        %v1091 = vld [vmem:[#allocation2 + $0x50] sm:$0xff]
        %v1092 = vld [vmem:[#allocation2 + $0x58] sm:$0xff]
        %v1093 = vld [vmem:[#allocation2 + $0x60] sm:$0xff]
        %v1094 = vld [vmem:[#allocation2 + $0x68] sm:$0xff]
        %v1095 = vld [vmem:[#allocation2 + $0x70] sm:$0xff]
        %v1096 = vld [vmem:[#allocation2 + $0x78] sm:$0xff]
        %v1097 = vld [vmem:[#allocation2 + $0x80] sm:$0xff]
        %v1098 = vld [vmem:[#allocation2 + $0x88] sm:$0xff]
        %v1099 = vld [vmem:[#allocation2 + $0x90] sm:$0xff]
        %v1100 = vld [vmem:[#allocation2 + $0x98] sm:$0xff]
        %v1101 = vld [vmem:[#allocation2 + $0xa0] sm:$0xff]
        %v1102 = vld [vmem:[#allocation2 + $0xa8] sm:$0xff]
        %v1103 = vld [vmem:[#allocation2 + $0xb0] sm:$0xff]
        %v1104 = vld [vmem:[#allocation2 + $0xb8] sm:$0xff]
        %v1105 = vld [vmem:[#allocation2 + $0xc0] sm:$0xff]
        %v1106 = vld [vmem:[#allocation2 + $0xc8] sm:$0xff]
        %v1107 = vld [vmem:[#allocation2 + $0xd0] sm:$0xff]
        %v1108 = vld [vmem:[#allocation2 + $0xd8] sm:$0xff]
        %v1109 = vld [vmem:[#allocation2 + $0xe0] sm:$0xff]
        %v1110 = vld [vmem:[#allocation2 + $0xe8] sm:$0xff]
        %v1111 = vld [vmem:[#allocation2 + $0xf0] sm:$0xff]
        %v1112 = vld [vmem:[#allocation2 + $0xf8] sm:$0xff]
        %v1113 = vadd.f32 %v1081, %v1002
        %v1114 = vadd.f32 %v1082, %v1004
        %v1115 = vadd.f32 %v1083, %v1007
        %v1116 = vadd.f32 %v1084, %v1009
        %v1117 = vadd.f32 %v1085, %v1012
        %v1118 = vadd.f32 %v1086, %v1014
        %v1119 = vadd.f32 %v1087, %v1017
        %v1120 = vadd.f32 %v1088, %v1019
        %v1121 = vadd.f32 %v1089, %v1022
        %v1122 = vadd.f32 %v1090, %v1024
        %v1123 = vadd.f32 %v1091, %v1027
        %v1124 = vadd.f32 %v1092, %v1029
        %v1125 = vadd.f32 %v1093, %v1032
        %v1126 = vadd.f32 %v1094, %v1034
        %v1127 = vadd.f32 %v1095, %v1037
        %v1128 = vadd.f32 %v1096, %v1039
        %v1129 = vadd.f32 %v1097, %v1042
        %v1130 = vadd.f32 %v1098, %v1044
        %v1131 = vadd.f32 %v1099, %v1047
        %v1132 = vadd.f32 %v1100, %v1049
        %v1133 = vadd.f32 %v1101, %v1052
        %v1134 = vadd.f32 %v1102, %v1054
        %v1135 = vadd.f32 %v1103, %v1057
        %v1136 = vadd.f32 %v1104, %v1059
        %v1137 = vadd.f32 %v1105, %v1062
        %v1138 = vadd.f32 %v1106, %v1064
        %v1139 = vadd.f32 %v1107, %v1067
        %v1140 = vadd.f32 %v1108, %v1069
        %v1141 = vadd.f32 %v1109, %v1072
        %v1142 = vadd.f32 %v1110, %v1074
        %v1143 = vadd.f32 %v1111, %v1077
        %v1144 = vadd.f32 %v1112, %v1079
        %1145 = vst [vmem:[#allocation2] sm:$0xff] %v1113
        %1146 = vst [vmem:[#allocation2 + $0x8] sm:$0xff] %v1114
        %1147 = vst [vmem:[#allocation2 + $0x10] sm:$0xff] %v1115
        %1148 = vst [vmem:[#allocation2 + $0x18] sm:$0xff] %v1116
        %1149 = vst [vmem:[#allocation2 + $0x20] sm:$0xff] %v1117
        %1150 = vst [vmem:[#allocation2 + $0x28] sm:$0xff] %v1118
        %1151 = vst [vmem:[#allocation2 + $0x30] sm:$0xff] %v1119
        %1152 = vst [vmem:[#allocation2 + $0x38] sm:$0xff] %v1120
        %1153 = vst [vmem:[#allocation2 + $0x40] sm:$0xff] %v1121
        %1154 = vst [vmem:[#allocation2 + $0x48] sm:$0xff] %v1122
        %1155 = vst [vmem:[#allocation2 + $0x50] sm:$0xff] %v1123
        %1156 = vst [vmem:[#allocation2 + $0x58] sm:$0xff] %v1124
        %1157 = vst [vmem:[#allocation2 + $0x60] sm:$0xff] %v1125
        %1158 = vst [vmem:[#allocation2 + $0x68] sm:$0xff] %v1126
        %1159 = vst [vmem:[#allocation2 + $0x70] sm:$0xff] %v1127
        %1160 = vst [vmem:[#allocation2 + $0x78] sm:$0xff] %v1128
        %1161 = vst [vmem:[#allocation2 + $0x80] sm:$0xff] %v1129
        %1162 = vst [vmem:[#allocation2 + $0x88] sm:$0xff] %v1130
        %1163 = vst [vmem:[#allocation2 + $0x90] sm:$0xff] %v1131
        %1164 = vst [vmem:[#allocation2 + $0x98] sm:$0xff] %v1132
        %1165 = vst [vmem:[#allocation2 + $0xa0] sm:$0xff] %v1133
        %1166 = vst [vmem:[#allocation2 + $0xa8] sm:$0xff] %v1134
        %1167 = vst [vmem:[#allocation2 + $0xb0] sm:$0xff] %v1135
        %1168 = vst [vmem:[#allocation2 + $0xb8] sm:$0xff] %v1136
        %1169 = vst [vmem:[#allocation2 + $0xc0] sm:$0xff] %v1137
        %1170 = vst [vmem:[#allocation2 + $0xc8] sm:$0xff] %v1138
        %1171 = vst [vmem:[#allocation2 + $0xd0] sm:$0xff] %v1139
        %1172 = vst [vmem:[#allocation2 + $0xd8] sm:$0xff] %v1140
        %1173 = vst [vmem:[#allocation2 + $0xe0] sm:$0xff] %v1141
        %1174 = vst [vmem:[#allocation2 + $0xe8] sm:$0xff] %v1142
        %1175 = vst [vmem:[#allocation2 + $0xf0] sm:$0xff] %v1143
        %1176 = vst [vmem:[#allocation2 + $0xf8] sm:$0xff] %v1144
        %v1177 = vld [vmem:[#allocation2] sm:$0xff]
        %v1178 = vld [vmem:[#allocation2 + $0x8] sm:$0xff]
        %v1179 = vld [vmem:[#allocation2 + $0x10] sm:$0xff]
        %v1180 = vld [vmem:[#allocation2 + $0x18] sm:$0xff]
        %v1181 = vld [vmem:[#allocation2 + $0x20] sm:$0xff]
        %v1182 = vld [vmem:[#allocation2 + $0x28] sm:$0xff]
        %v1183 = vld [vmem:[#allocation2 + $0x30] sm:$0xff]
        %v1184 = vld [vmem:[#allocation2 + $0x38] sm:$0xff]
        %v1185 = vld [vmem:[#allocation2 + $0x40] sm:$0xff]
        %v1186 = vld [vmem:[#allocation2 + $0x48] sm:$0xff]
        %v1187 = vld [vmem:[#allocation2 + $0x50] sm:$0xff]
        %v1188 = vld [vmem:[#allocation2 + $0x58] sm:$0xff]
        %v1189 = vld [vmem:[#allocation2 + $0x60] sm:$0xff]
        %v1190 = vld [vmem:[#allocation2 + $0x68] sm:$0xff]
        %v1191 = vld [vmem:[#allocation2 + $0x70] sm:$0xff]
        %v1192 = vld [vmem:[#allocation2 + $0x78] sm:$0xff]
        %v1193 = vld [vmem:[#allocation2 + $0x80] sm:$0xff]
        %v1194 = vld [vmem:[#allocation2 + $0x88] sm:$0xff]
        %v1195 = vld [vmem:[#allocation2 + $0x90] sm:$0xff]
        %v1196 = vld [vmem:[#allocation2 + $0x98] sm:$0xff]
        %v1197 = vld [vmem:[#allocation2 + $0xa0] sm:$0xff]
        %v1198 = vld [vmem:[#allocation2 + $0xa8] sm:$0xff]
        %v1199 = vld [vmem:[#allocation2 + $0xb0] sm:$0xff]
        %v1200 = vld [vmem:[#allocation2 + $0xb8] sm:$0xff]
        %v1201 = vld [vmem:[#allocation2 + $0xc0] sm:$0xff]
        %v1202 = vld [vmem:[#allocation2 + $0xc8] sm:$0xff]
        %v1203 = vld [vmem:[#allocation2 + $0xd0] sm:$0xff]
        %v1204 = vld [vmem:[#allocation2 + $0xd8] sm:$0xff]
        %v1205 = vld [vmem:[#allocation2 + $0xe0] sm:$0xff]
        %v1206 = vld [vmem:[#allocation2 + $0xe8] sm:$0xff]
        %v1207 = vld [vmem:[#allocation2 + $0xf0] sm:$0xff]
        %v1208 = vld [vmem:[#allocation2 + $0xf8] sm:$0xff]
        %v1209 = vld [vmem:[%s2] sm:$0x1]
        %v1211 = vperm.slane %v1209, 0
        %v1213 = vadd.f32 %v1177, %v1211
        %v1214 = vadd.f32 %v1178, %v1211
        %v1215 = vadd.f32 %v1179, %v1211
        %v1216 = vadd.f32 %v1180, %v1211
        %v1217 = vadd.f32 %v1181, %v1211
        %v1218 = vadd.f32 %v1182, %v1211
        %v1219 = vadd.f32 %v1183, %v1211
        %v1220 = vadd.f32 %v1184, %v1211
        %v1221 = vadd.f32 %v1185, %v1211
        %v1222 = vadd.f32 %v1186, %v1211
        %v1223 = vadd.f32 %v1187, %v1211
        %v1224 = vadd.f32 %v1188, %v1211
        %v1225 = vadd.f32 %v1189, %v1211
        %v1226 = vadd.f32 %v1190, %v1211
        %v1227 = vadd.f32 %v1191, %v1211
        %v1228 = vadd.f32 %v1192, %v1211
        %v1229 = vadd.f32 %v1193, %v1211
        %v1230 = vadd.f32 %v1194, %v1211
        %v1231 = vadd.f32 %v1195, %v1211
        %v1232 = vadd.f32 %v1196, %v1211
        %v1233 = vadd.f32 %v1197, %v1211
        %v1234 = vadd.f32 %v1198, %v1211
        %v1235 = vadd.f32 %v1199, %v1211
        %v1236 = vadd.f32 %v1200, %v1211
        %v1237 = vadd.f32 %v1201, %v1211
        %v1238 = vadd.f32 %v1202, %v1211
        %v1239 = vadd.f32 %v1203, %v1211
        %v1240 = vadd.f32 %v1204, %v1211
        %v1241 = vadd.f32 %v1205, %v1211
        %v1242 = vadd.f32 %v1206, %v1211
        %v1243 = vadd.f32 %v1207, %v1211
        %v1244 = vadd.f32 %v1208, %v1211
        %v1245 = vmax.f32 %v1213, 0.0
        %v1246 = vmax.f32 %v1214, 0.0
        %v1247 = vmax.f32 %v1215, 0.0
        %v1248 = vmax.f32 %v1216, 0.0
        %v1249 = vmax.f32 %v1217, 0.0
        %v1250 = vmax.f32 %v1218, 0.0
        %v1251 = vmax.f32 %v1219, 0.0
        %v1252 = vmax.f32 %v1220, 0.0
        %v1253 = vmax.f32 %v1221, 0.0
        %v1254 = vmax.f32 %v1222, 0.0
        %v1255 = vmax.f32 %v1223, 0.0
        %v1256 = vmax.f32 %v1224, 0.0
        %v1257 = vmax.f32 %v1225, 0.0
        %v1258 = vmax.f32 %v1226, 0.0
        %v1259 = vmax.f32 %v1227, 0.0
        %v1260 = vmax.f32 %v1228, 0.0
        %v1261 = vmax.f32 %v1229, 0.0
        %v1262 = vmax.f32 %v1230, 0.0
        %v1263 = vmax.f32 %v1231, 0.0
        %v1264 = vmax.f32 %v1232, 0.0
        %v1265 = vmax.f32 %v1233, 0.0
        %v1266 = vmax.f32 %v1234, 0.0
        %v1267 = vmax.f32 %v1235, 0.0
        %v1268 = vmax.f32 %v1236, 0.0
        %v1269 = vmax.f32 %v1237, 0.0
        %v1270 = vmax.f32 %v1238, 0.0
        %v1271 = vmax.f32 %v1239, 0.0
        %v1272 = vmax.f32 %v1240, 0.0
        %v1273 = vmax.f32 %v1241, 0.0
        %v1274 = vmax.f32 %v1242, 0.0
        %v1275 = vmax.f32 %v1243, 0.0
        %v1276 = vmax.f32 %v1244, 0.0
        %1277 = vst [vmem:[%s163] sm:$0xff] %v1245
        %1278 = vst [vmem:[%s163 + $0x8] sm:$0xff] %v1246
        %1279 = vst [vmem:[%s163 + $0x10] sm:$0xff] %v1247
        %1280 = vst [vmem:[%s163 + $0x18] sm:$0xff] %v1248
        %1281 = vst [vmem:[%s163 + $0x20] sm:$0xff] %v1249
        %1282 = vst [vmem:[%s163 + $0x28] sm:$0xff] %v1250
        %1283 = vst [vmem:[%s163 + $0x30] sm:$0xff] %v1251
        %1284 = vst [vmem:[%s163 + $0x38] sm:$0xff] %v1252
        %1285 = vst [vmem:[%s163 + $0x40] sm:$0xff] %v1253
        %1286 = vst [vmem:[%s163 + $0x48] sm:$0xff] %v1254
        %1287 = vst [vmem:[%s163 + $0x50] sm:$0xff] %v1255
        %1288 = vst [vmem:[%s163 + $0x58] sm:$0xff] %v1256
        %1289 = vst [vmem:[%s163 + $0x60] sm:$0xff] %v1257
        %1290 = vst [vmem:[%s163 + $0x68] sm:$0xff] %v1258
        %1291 = vst [vmem:[%s163 + $0x70] sm:$0xff] %v1259
        %1292 = vst [vmem:[%s163 + $0x78] sm:$0xff] %v1260
        %1293 = vst [vmem:[%s163 + $0x80] sm:$0xff] %v1261
        %1294 = vst [vmem:[%s163 + $0x88] sm:$0xff] %v1262
        %1295 = vst [vmem:[%s163 + $0x90] sm:$0xff] %v1263
        %1296 = vst [vmem:[%s163 + $0x98] sm:$0xff] %v1264
        %1297 = vst [vmem:[%s163 + $0xa0] sm:$0xff] %v1265
        %1298 = vst [vmem:[%s163 + $0xa8] sm:$0xff] %v1266
        %1299 = vst [vmem:[%s163 + $0xb0] sm:$0xff] %v1267
        %1300 = vst [vmem:[%s163 + $0xb8] sm:$0xff] %v1268
        %1301 = vst [vmem:[%s163 + $0xc0] sm:$0xff] %v1269
        %1302 = vst [vmem:[%s163 + $0xc8] sm:$0xff] %v1270
        %1303 = vst [vmem:[%s163 + $0xd0] sm:$0xff] %v1271
        %1304 = vst [vmem:[%s163 + $0xd8] sm:$0xff] %v1272
        %1305 = vst [vmem:[%s163 + $0xe0] sm:$0xff] %v1273
        %1306 = vst [vmem:[%s163 + $0xe8] sm:$0xff] %v1274
        %1307 = vst [vmem:[%s163 + $0xf0] sm:$0xff] %v1275
        %1308 = vst [vmem:[%s163 + $0xf8] sm:$0xff] %v1276
        %s1309 = sand.u32 %s93, 1
        %s1310 = scalar_lea.sflag [#allocation4], %s1309
        %s1311 = sand.u32 %s93, 1
        %s1312 = smul.addr %s1311, 256
        %s1313 = scalar_lea.vmem [#allocation3], %s1312
        // Predicated region
        $region33: #{tpu_custom_call.1} parent=31 // pred_check
          %p1314 = pneg %p103
        $region34: #{tpu_custom_call.1} parent=31 // pred_check_branch
          %1316 = sbr.rel (%p1314) target = $region36
        $region35: #{tpu_custom_call.1} parent=31 // pred_region
          %1318 = vsyncadd %s1310, 0
          %s1319 = smul.addr %s17, 32
          %s1320 = smul.addr %s1319, 8
          %s1321 = scalar_lea.hbm %s3, %s1320
          %s1322 = sshll.u32 %s1313, 4
          %s1323 = int_to_ptr.vmem [resolvable:$true] %s1322
          %s1324 = sshll.u32 %s1321, 4
          %s1325 = int_to_ptr.hbm [resolvable:$true] %s1324
          %1330 = dma.vmem_to_hbm [thread:$0]  %s1323, 4096, %s1325, %s1310, 128, 128, 8
        $region36: #{tpu_custom_call.1} parent=31 // pred_fallthru
          _
      $region32: #{tpu_custom_call.1} parent=5 // pred_fallthru
        _
      %p1331 = scmp.le.s32.totalorder 2, %s12
      // Predicated region
      $region37: #{tpu_custom_call.1} parent=5 // pred_check
        %p1332 = pneg %p1331
      $region38: #{tpu_custom_call.1} parent=5 // pred_check_branch
        %1334 = sbr.rel (%p1332) target = $region40
      $region39: #{tpu_custom_call.1} parent=5 // pred_region
        %s1335 = ssub.s32 %s12, 2
        // Predicated region
        $region41: #{tpu_custom_call.1} parent=39 // pred_check
          %p1336 = pneg %p109
        $region42: #{tpu_custom_call.1} parent=39 // pred_check_branch
          %1338 = sbr.rel (%p1336) target = $region44
        $region43: #{tpu_custom_call.1} parent=39 // pred_region
          %s1339 = sand.u32 %s94, 1
          %s1340 = scalar_lea.sflag [#allocation4], %s1339
          %s1341 = sand.u32 %s94, 1
          %s1342 = smul.addr %s1341, 256
          %s1343 = scalar_lea.vmem [#allocation3], %s1342
          %1345 = dma.done %s1340, 4096
        $region44: #{tpu_custom_call.1} parent=39 // pred_fallthru
          _
      $region40: #{tpu_custom_call.1} parent=5 // pred_fallthru
        _
    $region6: #{tpu_custom_call.1} parent=1 // loop_footer
      %s16 = sadd.s32 1, %s12
    $region7: #{tpu_custom_call.1} parent=1 // loop_footer_branch
      %11 = sbr.rel target = $region3
    $region8: #{tpu_custom_call.1} parent=1 // loop_exit
      _
    %1346 = vsyncpa [#allocation4], 1
    %s1347 = scalar_lea.sflag [#allocation4], 1
    %1348 = vsyncpa %s1347, 1

</llo_original>
